<compile_context>
chip_gen: v5e
topology: v5e:2x2
jax: 0.10.0
libtpu: 0.0.40
codegen_flags: <defaults>
</compile_context>

<pallas_src>
import functools

import numpy as np
import jax
import jax.numpy as jnp
from jax.experimental import pallas as pl
from jax.experimental.pallas import tpu as pltpu


# ---------------------------------------------------------------------------
# Pallas kernel: all pyramid bins fused; grid = (batch, C-contraction tiles).
# ---------------------------------------------------------------------------
def ppm_fused_kernel(x_ref, pt_ref, wt_ref, bias_ref, mask_ref, ut_ref,
                     o_ref, y_acc, *, c_tile, c_in, n_c_tiles):
    c = pl.program_id(1)
    nc = pl.num_programs(1)

    x2d = x_ref[0]                                   # (c_tile, HW), input dtype

    # Echo this x tile straight into its slice of the concatenated output.
    # The output block is VMEM-resident across the C-contraction axis, so the
    # echo costs exactly one HBM write of x (no wrapper concat, no re-read).
    if n_c_tiles == 1:
        o_ref[0, :c_in, :] = x2d.astype(o_ref.dtype)
    else:
        off = c * c_tile
        if c_tile % 8 == 0:
            off = pl.multiple_of(off, c_tile)
        o_ref[0, pl.ds(off, c_tile), :] = x2d.astype(o_ref.dtype)

    @pl.when(c == 0)
    def _init():
        y_acc[...] = jnp.zeros_like(y_acc)

    # Adaptive average pooling for every bin at once (bf16 MXU, f32 accum):
    # (c_tile, HW) @ (HW, B2P).
    xc = x2d.astype(pt_ref.dtype)
    pooled = jnp.dot(xc, pt_ref[...], preferred_element_type=jnp.float32)
    # Partial 1x1 conv over this C tile (BN scale pre-folded into the weight):
    # (nR, c_tile) @ (c_tile, B2P) accumulated in f32 scratch.
    y_acc[...] += jnp.dot(wt_ref[...], pooled.astype(wt_ref.dtype),
                          preferred_element_type=jnp.float32)

    @pl.when(c == nc - 1)
    def _finalize():
        # BN bias + ReLU, zero cross-bin (and padded) columns so the dense
        # upsample matmul below acts exactly block-diagonally per branch.
        y = jnp.maximum(y_acc[...] + bias_ref[...], 0.0) * mask_ref[...]
        # Bilinear upsample (align_corners=True) for every bin:
        # (nR, B2P) @ (B2P, HW).
        up = jnp.dot(y.astype(ut_ref.dtype), ut_ref[...],
                     preferred_element_type=jnp.float32)
        o_ref[0, c_in:, :] = up.astype(o_ref.dtype)


def _vmem_limit_bytes():
    """Per-generation VMEM budget with headroom for compiler scratch."""
    try:
        cap = pltpu.get_tpu_info().vmem_capacity_bytes
    except Exception:
        cap = 64 * 1024 * 1024          # conservative default (v7x-sized)
    # ~75% of physical VMEM, capped below the 128 MiB chips' limit:
    # -> ~48 MiB on v7x (64 MiB), ~96 MiB on v5e / v6e (128 MiB).
    return int(min(cap * 3 // 4, 100 * 1024 * 1024))


def _choose_c_tile(c_in, max_tile=512):
    """Contraction tile: full C when small, else a multiple-of-128 divisor of C
    (keeps the conv-weight block's last dim lane-aligned)."""
    if c_in <= max_tile:
        return c_in
    for t in range(max_tile, 127, -128):
        if c_in % t == 0:
            return t
    return c_in


def ppm_fused_pallas(x2d, pt_all, wt_all, bias_all, blkmask, ut_all, c_total):
    N, C, HW = x2d.shape
    B2P = pt_all.shape[1]
    NR = wt_all.shape[0]
    c_tile = _choose_c_tile(C)
    ct = C // c_tile

    flops = int(2 * N * (C * HW * B2P + NR * C * B2P + NR * B2P * HW))
    bytes_accessed = int(
        x2d.dtype.itemsize * x2d.size
        + pt_all.dtype.itemsize * pt_all.size
        + wt_all.dtype.itemsize * wt_all.size
        + 4 * (bias_all.size + blkmask.size)
        + ut_all.dtype.itemsize * ut_all.size
        + x2d.dtype.itemsize * N * c_total * HW)

    kernel = functools.partial(ppm_fused_kernel,
                               c_tile=c_tile, c_in=C, n_c_tiles=ct)

    def build(single_buffer_consts):
        def const_spec(shape):
            # Constant operands never change across the grid: no point
            # double-buffering them (reclaims VMEM for bigger x/output tiles).
            if single_buffer_consts:
                return pl.BlockSpec(shape, lambda n, c: (0, 0),
                                    pipeline_mode=pl.Buffered(1))
            return pl.BlockSpec(shape, lambda n, c: (0, 0))

        return pl.pallas_call(
            kernel,
            out_shape=jax.ShapeDtypeStruct((N, c_total, HW), x2d.dtype),
            grid=(N, ct),
            in_specs=[
                pl.BlockSpec((1, c_tile, HW), lambda n, c: (n, c, 0)),  # x tile
                const_spec((HW, B2P)),                                  # pool^T (all bins)
                pl.BlockSpec((NR, c_tile), lambda n, c: (0, c)),        # folded conv w^T tile
                const_spec((NR, 1)),                                    # folded BN bias
                const_spec((NR, B2P)),                                  # block-diag mask
                const_spec((B2P, HW)),                                  # upsample^T (all bins)
            ],
            out_specs=pl.BlockSpec((1, c_total, HW), lambda n, c: (n, 0, 0)),
            scratch_shapes=[pltpu.VMEM((NR, B2P), jnp.float32)],        # y accumulator
            compiler_params=pltpu.CompilerParams(
                dimension_semantics=("parallel", "arbitrary"),
                vmem_limit_bytes=_vmem_limit_bytes()),
            cost_estimate=pl.CostEstimate(
                flops=flops, transcendentals=0, bytes_accessed=bytes_accessed),
        )

    args = (x2d, pt_all, wt_all, bias_all, blkmask, ut_all)
    try:
        return build(True)(*args)
    except Exception:
        # Fallback if pipeline_mode=pl.Buffered(1) is unsupported on this
        # JAX/Mosaic version; semantics are identical (only buffering differs).
        return build(False)(*args)


# ---------------------------------------------------------------------------
# Glue: pooling / interpolation matrices and parameter construction (host).
# ---------------------------------------------------------------------------
def adaptive_pool_matrix(in_size, out_size):
    """M[i, j] such that (M @ v) reproduces AdaptiveAvgPool1d semantics."""
    M = np.zeros((out_size, in_size), np.float32)
    for i in range(out_size):
        start = (i * in_size) // out_size
        end = -(-((i + 1) * in_size) // out_size)   # ceil
        M[i, start:end] = 1.0 / (end - start)
    return M


def bilinear_upsample_matrix(out_size, in_size):
    """M[i, j] for 1-D bilinear interpolation with align_corners=True."""
    M = np.zeros((out_size, in_size), np.float32)
    if in_size == 1:
        M[:, 0] = 1.0
        return M
    scale = (in_size - 1) / (out_size - 1) if out_size > 1 else 0.0
    for i in range(out_size):
        src = i * scale
        i0 = min(int(np.floor(src)), in_size - 1)
        i1 = min(i0 + 1, in_size - 1)
        frac = src - i0
        M[i, i0] += 1.0 - frac
        M[i, i1] += frac
    return M


@functools.lru_cache(maxsize=None)
def build_spatial_operators(H, W, bins):
    """Static matrices: stacked pool^T / upsample^T, B2 zero-padded to 128."""
    pts, uts, sizes = [], [], []
    for b in bins:
        ph = adaptive_pool_matrix(H, b)              # (b, H)
        pw = adaptive_pool_matrix(W, b)              # (b, W)
        uh = bilinear_upsample_matrix(H, b)          # (H, b)
        uw = bilinear_upsample_matrix(W, b)          # (W, b)
        pts.append(np.kron(ph, pw).T)                # (H*W, b*b)
        uts.append(np.kron(uh, uw).T)                # (b*b, H*W)
        sizes.append(b * b)
    pt_all = np.concatenate(pts, axis=1)             # (H*W, B2)
    ut_all = np.concatenate(uts, axis=0)             # (B2, H*W)
    B2 = pt_all.shape[1]
    B2P = ((B2 + 127) // 128) * 128                  # lane-align pooled/y dim
    pt_pad = np.zeros((pt_all.shape[0], B2P), np.float32)
    pt_pad[:, :B2] = pt_all
    ut_pad = np.zeros((B2P, ut_all.shape[1]), np.float32)
    ut_pad[:B2, :] = ut_all
    return pt_pad, ut_pad, tuple(sizes), B2P


def build_block_mask(sizes, R, b2_padded):
    """0/1 mask selecting the block-diagonal (bin-matched) entries of y."""
    mask = np.zeros((len(sizes) * R, b2_padded), np.float32)
    off = 0
    for i, s in enumerate(sizes):
        mask[i * R:(i + 1) * R, off:off + s] = 1.0
        off += s
    return mask


def make_ppm_params(key, in_dim, reduction_dim, bins):
    """Deterministic synthetic parameters for each pyramid branch."""
    eps = 1e-5
    params = []
    for i, _ in enumerate(bins):
        k = jax.random.fold_in(key, i)
        kw, kg, kb, km, kv = jax.random.split(k, 5)
        # torch Conv2d weight (R, C, 1, 1) -> stored here as (C, R).
        w = 0.1 * jax.random.normal(kw, (in_dim, reduction_dim), jnp.float32)
        gamma = 1.0 + 0.1 * jax.random.normal(kg, (reduction_dim,), jnp.float32)
        beta = 0.1 * jax.random.normal(kb, (reduction_dim,), jnp.float32)
        rmean = 0.1 * jax.random.normal(km, (reduction_dim,), jnp.float32)
        rvar = jnp.abs(jax.random.normal(kv, (reduction_dim,), jnp.float32)) + 0.5
        scale = gamma / jnp.sqrt(rvar + eps)
        bias = beta - rmean * scale
        params.append(dict(w=w,
                           scale=scale.reshape(1, reduction_dim),
                           bias=bias.reshape(1, reduction_dim)))
    return params


def fold_params(params, R):
    """Fold BN scale into the conv weight; stack all bins channel-first."""
    wts, biases = [], []
    for p in params:
        wts.append((p["w"] * p["scale"]).T)          # (R, C), scale folded in
        biases.append(p["bias"].reshape(R, 1))       # (R, 1)
    wt_all = jnp.concatenate(wts, axis=0)            # (len(bins)*R, C)
    bias_all = jnp.concatenate(biases, axis=0)       # (len(bins)*R, 1)
    return wt_all, bias_all


def ppm_forward(x_nchw, params, bins, compute_dtype=jnp.bfloat16):
    """Full PPM forward: returns NCHW concat [x, branch_0, branch_1, ...]."""
    N, C, H, W = x_nchw.shape
    R = params[0]["w"].shape[1]
    HW = H * W
    c_total = C + len(bins) * R

    pt_np, ut_np, sizes, _ = build_spatial_operators(H, W, tuple(bins))
    mask_np = build_block_mask(sizes, R, pt_np.shape[1])
    wt_all, bias_all = fold_params(params, R)

    x2d = x_nchw.reshape(N, C, HW)                   # free, contiguous reshape
    out2d = ppm_fused_pallas(
        x2d,
        jnp.asarray(pt_np, compute_dtype),           # bf16 MXU operands …
        wt_all.astype(compute_dtype),
        bias_all,                                    # … bias/mask stay f32
        jnp.asarray(mask_np),
        jnp.asarray(ut_np, compute_dtype),
        c_total)
    return out2d.reshape(N, c_total, H, W)


def ppm_forward_ref(x_nchw, params, bins):
    """Pure-JAX f32 reference (same math) for a correctness sanity check."""
    N, C, H, W = x_nchw.shape
    x_nhwc = jnp.transpose(x_nchw, (0, 2, 3, 1)).astype(jnp.float32)
    outs = [x_nchw]
    for p, b in zip(params, bins):
        ph = jnp.asarray(adaptive_pool_matrix(H, b))
        pw = jnp.asarray(adaptive_pool_matrix(W, b))
        uh = jnp.asarray(bilinear_upsample_matrix(H, b))
        uw = jnp.asarray(bilinear_upsample_matrix(W, b))
        pooled = jnp.einsum("ph,qw,nhwc->npqc", ph, pw, x_nhwc)
        y = jnp.einsum("npqc,cr->npqr", pooled, p["w"])
        y = jnp.maximum(y * p["scale"][0] + p["bias"][0], 0.0)
        up = jnp.einsum("hp,wq,npqr->nhwr", uh, uw, y)
        outs.append(jnp.transpose(up, (0, 3, 1, 2)).astype(x_nchw.dtype))
    return jnp.concatenate(outs, axis=1)


if __name__ == "__main__":
    # Small shapes consistent with PPM(in_dim=4, reduction_dim=8, bins=(1,2,4,8))
    N, C, H, W = 2, 4, 16, 16
    reduction_dim = 8
    bins = (1, 2, 4, 8)

    key = jax.random.PRNGKey(0)
    kx, kp = jax.random.split(key)
    x = jax.random.normal(kx, (N, C, H, W), jnp.float32)   # NCHW, like PyTorch
    params = make_ppm_params(kp, C, reduction_dim, bins)

    out = jax.block_until_ready(ppm_forward(x, params, bins))

    # Sanity check against pure-JAX f32 reference.
    ref = jax.block_until_ready(ppm_forward_ref(x, params, bins))
    assert out.shape == (N, C + len(bins) * reduction_dim, H, W), out.shape
    # Echoed x channels must be exact (plain f32 copy).
    assert np.array_equal(np.asarray(out[:, :C]), np.asarray(x))
    # Pyramid branches: bf16 MXU inputs with f32 accumulation -> loose tol.
    assert np.allclose(np.asarray(out[:, C:]), np.asarray(ref[:, C:]),
                       atol=3e-2, rtol=3e-2)

    print("KERNEL_OK")
</pallas_src>

<mosaic_0001>
module attributes {stable_mosaic.version = 11 : i64} {
  func.func @ppm_fused_kernel(%arg0: i32, %arg1: i32, %arg2: memref<1x4x256xf32, #tpu.memory_space<vmem>>, %arg3: memref<256x128xbf16, #tpu.memory_space<vmem>>, %arg4: memref<32x4xbf16, #tpu.memory_space<vmem>>, %arg5: memref<32x1xf32, #tpu.memory_space<vmem>>, %arg6: memref<32x128xf32, #tpu.memory_space<vmem>>, %arg7: memref<128x256xbf16, #tpu.memory_space<vmem>>, %arg8: memref<1x36x256xf32, #tpu.memory_space<vmem>>, %arg9: memref<32x128xf32, #tpu.memory_space<vmem>>) attributes {dimension_semantics = [#tpu.dimension_semantics<parallel>, #tpu.dimension_semantics<arbitrary>], iteration_bounds = array<i64: 2, 1>, scalar_prefetch = 0 : i64, scratch_operands = 1 : i64, tpu.core_type = #tpu.core_type<tc>, window_params = [{transform_indices = @transform_0, window_bounds = array<i64: 1, 4, 256>}, {pipeline_mode = #tpu.pipeline_mode<synchronous>, transform_indices = @transform_1, window_bounds = array<i64: 256, 128>}, {transform_indices = @transform_2, window_bounds = array<i64: 32, 4>}, {pipeline_mode = #tpu.pipeline_mode<synchronous>, transform_indices = @transform_3, window_bounds = array<i64: 32, 1>}, {pipeline_mode = #tpu.pipeline_mode<synchronous>, transform_indices = @transform_4, window_bounds = array<i64: 32, 128>}, {pipeline_mode = #tpu.pipeline_mode<synchronous>, transform_indices = @transform_5, window_bounds = array<i64: 128, 256>}, {transform_indices = @transform_6, window_bounds = array<i64: 1, 36, 256>}]} {
    %c0 = arith.constant 0 : index
    %c0_0 = arith.constant 0 : index
    %c0_1 = arith.constant 0 : index
    %0 = vector.load %arg2[%c0, %c0_0, %c0_1] : memref<1x4x256xf32, #tpu.memory_space<vmem>>, vector<1x4x256xf32>
    %1 = vector.shape_cast %0 : vector<1x4x256xf32> to vector<4x256xf32>
    %c0_2 = arith.constant 0 : index
    %c0_3 = arith.constant 0 : index
    %c0_4 = arith.constant 0 : index
    %2 = vector.load %arg8[%c0_2, %c0_3, %c0_4] : memref<1x36x256xf32, #tpu.memory_space<vmem>>, vector<1x4x256xf32>
    %3 = vector.shape_cast %2 : vector<1x4x256xf32> to vector<4x256xf32>
    %4 = vector.shape_cast %1 : vector<4x256xf32> to vector<1x4x256xf32>
    tpu.vector_store %arg8[%c0_2, %c0_3, %c0_4], %4 {strides = array<i32>} : memref<1x36x256xf32, #tpu.memory_space<vmem>>, vector<1x4x256xf32>,
    %c0_i32 = arith.constant 0 : i32
    %5 = arith.cmpi eq, %arg1, %c0_i32 : i32
    %6 = arith.extui %5 : i1 to i32
    %c0_i32_5 = arith.constant 0 : i32
    %7 = arith.cmpi ne, %6, %c0_i32_5 : i32
    scf.if %7 {
      %cst_17 = arith.constant 0.000000e+00 : f32
      %20 = vector.broadcast %cst_17 : f32 to vector<32x128xf32>
      %c0_18 = arith.constant 0 : index
      %c0_19 = arith.constant 0 : index
      %21 = vector.load %arg9[%c0_18, %c0_19] : memref<32x128xf32, #tpu.memory_space<vmem>>, vector<32x128xf32>
      tpu.vector_store %arg9[%c0_18, %c0_19], %20 {strides = array<i32>} : memref<32x128xf32, #tpu.memory_space<vmem>>, vector<32x128xf32>,
    } else {
    }
    %8 = arith.truncf %1 : vector<4x256xf32> to vector<4x256xbf16>
    %c0_6 = arith.constant 0 : index
    %c0_7 = arith.constant 0 : index
    %9 = vector.load %arg3[%c0_6, %c0_7] : memref<256x128xbf16, #tpu.memory_space<vmem>>, vector<256x128xbf16>
    %cst = arith.constant dense<0.000000e+00> : vector<4x128xf32>
    %10 = tpu.matmul %8, %9, %cst {dimension_numbers = #tpu.dot_dimension_numbers<[1], [0], [0], [1], [0, 0, 1, 1], [], []>} : vector<4x256xbf16>, vector<256x128xbf16>, vector<4x128xf32> -> vector<4x128xf32>
    %c0_8 = arith.constant 0 : index
    %c0_9 = arith.constant 0 : index
    %11 = vector.load %arg9[%c0_8, %c0_9] : memref<32x128xf32, #tpu.memory_space<vmem>>, vector<32x128xf32>
    %c0_10 = arith.constant 0 : index
    %c0_11 = arith.constant 0 : index
    %12 = vector.load %arg4[%c0_10, %c0_11] : memref<32x4xbf16, #tpu.memory_space<vmem>>, vector<32x4xbf16>
    %13 = arith.truncf %10 : vector<4x128xf32> to vector<4x128xbf16>
    %cst_12 = arith.constant dense<0.000000e+00> : vector<32x128xf32>
    %14 = tpu.matmul %12, %13, %cst_12 {dimension_numbers = #tpu.dot_dimension_numbers<[1], [0], [0], [1], [0, 0, 1, 1], [], []>} : vector<32x4xbf16>, vector<4x128xbf16>, vector<32x128xf32> -> vector<32x128xf32>
    %15 = arith.addf %11, %14 : vector<32x128xf32>
    %c0_13 = arith.constant 0 : index
    %c0_14 = arith.constant 0 : index
    %16 = vector.load %arg9[%c0_13, %c0_14] : memref<32x128xf32, #tpu.memory_space<vmem>>, vector<32x128xf32>
    tpu.vector_store %arg9[%c0_13, %c0_14], %15 {strides = array<i32>} : memref<32x128xf32, #tpu.memory_space<vmem>>, vector<32x128xf32>,
    %c0_i32_15 = arith.constant 0 : i32
    %17 = arith.cmpi eq, %arg1, %c0_i32_15 : i32
    %18 = arith.extui %17 : i1 to i32
    %c0_i32_16 = arith.constant 0 : i32
    %19 = arith.cmpi ne, %18, %c0_i32_16 : i32
    scf.if %19 {
      %c0_17 = arith.constant 0 : index
      %c0_18 = arith.constant 0 : index
      %20 = vector.load %arg9[%c0_17, %c0_18] : memref<32x128xf32, #tpu.memory_space<vmem>>, vector<32x128xf32>
      %c0_19 = arith.constant 0 : index
      %c0_20 = arith.constant 0 : index
      %21 = vector.load %arg5[%c0_19, %c0_20] : memref<32x1xf32, #tpu.memory_space<vmem>>, vector<32x1xf32>
      %22 = vector.broadcast %21 : vector<32x1xf32> to vector<32x128xf32>
      %23 = arith.addf %20, %22 : vector<32x128xf32>
      %cst_21 = arith.constant 0.000000e+00 : f32
      %24 = vector.broadcast %cst_21 : f32 to vector<32x128xf32>
      %25 = arith.maximumf %23, %24 : vector<32x128xf32>
      %c0_22 = arith.constant 0 : index
      %c0_23 = arith.constant 0 : index
      %26 = vector.load %arg6[%c0_22, %c0_23] : memref<32x128xf32, #tpu.memory_space<vmem>>, vector<32x128xf32>
      %27 = arith.mulf %25, %26 : vector<32x128xf32>
      %28 = arith.truncf %27 : vector<32x128xf32> to vector<32x128xbf16>
      %c0_24 = arith.constant 0 : index
      %c0_25 = arith.constant 0 : index
      %29 = vector.load %arg7[%c0_24, %c0_25] : memref<128x256xbf16, #tpu.memory_space<vmem>>, vector<128x256xbf16>
      %cst_26 = arith.constant dense<0.000000e+00> : vector<32x256xf32>
      %30 = tpu.matmul %28, %29, %cst_26 {dimension_numbers = #tpu.dot_dimension_numbers<[1], [0], [0], [1], [0, 0, 1, 1], [], []>} : vector<32x128xbf16>, vector<128x256xbf16>, vector<32x256xf32> -> vector<32x256xf32>
      %c0_27 = arith.constant 0 : index
      %c4 = arith.constant 4 : index
      %c0_28 = arith.constant 0 : index
      %31 = vector.load %arg8[%c0_27, %c4, %c0_28] : memref<1x36x256xf32, #tpu.memory_space<vmem>>, vector<1x32x256xf32>
      %32 = vector.shape_cast %31 : vector<1x32x256xf32> to vector<32x256xf32>
      %33 = vector.shape_cast %30 : vector<32x256xf32> to vector<1x32x256xf32>
      tpu.vector_store %arg8[%c0_27, %c4, %c0_28], %33 {strides = array<i32>} : memref<1x36x256xf32, #tpu.memory_space<vmem>>, vector<1x32x256xf32>,
    } else {
    }
    return
  }
  func.func @transform_0(%arg0: i32, %arg1: i32) -> (i32, i32, i32) {
    %c0_i32 = arith.constant 0 : i32
    %c0_i32_0 = arith.constant 0 : i32
    return %arg0, %arg1, %c0_i32 : i32, i32, i32
  }
  func.func @transform_1(%arg0: i32, %arg1: i32) -> (i32, i32) {
    %c0_i32 = arith.constant 0 : i32
    %c0_i32_0 = arith.constant 0 : i32
    %c0_i32_1 = arith.constant 0 : i32
    return %c0_i32, %c0_i32_0 : i32, i32
  }
  func.func @transform_2(%arg0: i32, %arg1: i32) -> (i32, i32) {
    %c0_i32 = arith.constant 0 : i32
    %c0_i32_0 = arith.constant 0 : i32
    return %c0_i32, %arg1 : i32, i32
  }
  func.func @transform_3(%arg0: i32, %arg1: i32) -> (i32, i32) {
    %c0_i32 = arith.constant 0 : i32
    %c0_i32_0 = arith.constant 0 : i32
    %c0_i32_1 = arith.constant 0 : i32
    return %c0_i32, %c0_i32_0 : i32, i32
  }
  func.func @transform_4(%arg0: i32, %arg1: i32) -> (i32, i32) {
    %c0_i32 = arith.constant 0 : i32
    %c0_i32_0 = arith.constant 0 : i32
    %c0_i32_1 = arith.constant 0 : i32
    return %c0_i32, %c0_i32_0 : i32, i32
  }
  func.func @transform_5(%arg0: i32, %arg1: i32) -> (i32, i32) {
    %c0_i32 = arith.constant 0 : i32
    %c0_i32_0 = arith.constant 0 : i32
    %c0_i32_1 = arith.constant 0 : i32
    return %c0_i32, %c0_i32_0 : i32, i32
  }
  func.func @transform_6(%arg0: i32, %arg1: i32) -> (i32, i32, i32) {
    %c0_i32 = arith.constant 0 : i32
    %c0_i32_0 = arith.constant 0 : i32
    %c0_i32_1 = arith.constant 0 : i32
    return %arg0, %c0_i32, %c0_i32_0 : i32, i32, i32
  }
}

module attributes {stable_mosaic.version = 11 : i64} {
  func.func @ppm_fused_kernel(%arg0: i32, %arg1: i32, %arg2: memref<1x4x256xf32, #tpu.memory_space<vmem>>, %arg3: memref<256x128xbf16, #tpu.memory_space<vmem>>, %arg4: memref<32x4xbf16, #tpu.memory_space<vmem>>, %arg5: memref<32x1xf32, #tpu.memory_space<vmem>>, %arg6: memref<32x128xf32, #tpu.memory_space<vmem>>, %arg7: memref<128x256xbf16, #tpu.memory_space<vmem>>, %arg8: memref<1x36x256xf32, #tpu.memory_space<vmem>>, %arg9: memref<32x128xf32, #tpu.memory_space<vmem>>) attributes {dimension_semantics = [#tpu.dimension_semantics<parallel>, #tpu.dimension_semantics<arbitrary>], iteration_bounds = array<i64: 2, 1>, scalar_prefetch = 0 : i64, scratch_operands = 1 : i64, tpu.core_type = #tpu.core_type<tc>, window_params = [{transform_indices = @transform_0, window_bounds = array<i64: 1, 4, 256>}, {pipeline_mode = #tpu.pipeline_mode<synchronous>, transform_indices = @transform_1, window_bounds = array<i64: 256, 128>}, {transform_indices = @transform_2, window_bounds = array<i64: 32, 4>}, {pipeline_mode = #tpu.pipeline_mode<synchronous>, transform_indices = @transform_3, window_bounds = array<i64: 32, 1>}, {pipeline_mode = #tpu.pipeline_mode<synchronous>, transform_indices = @transform_4, window_bounds = array<i64: 32, 128>}, {pipeline_mode = #tpu.pipeline_mode<synchronous>, transform_indices = @transform_5, window_bounds = array<i64: 128, 256>}, {transform_indices = @transform_6, window_bounds = array<i64: 1, 36, 256>}]} {
    %c0 = arith.constant 0 : index
    %c0_0 = arith.constant 0 : index
    %c0_1 = arith.constant 0 : index
    %0 = vector.load %arg2[%c0, %c0_0, %c0_1] : memref<1x4x256xf32, #tpu.memory_space<vmem>>, vector<1x4x256xf32>
    %1 = vector.shape_cast %0 : vector<1x4x256xf32> to vector<4x256xf32>
    %c0_2 = arith.constant 0 : index
    %c0_3 = arith.constant 0 : index
    %c0_4 = arith.constant 0 : index
    %2 = vector.load %arg8[%c0_2, %c0_3, %c0_4] : memref<1x36x256xf32, #tpu.memory_space<vmem>>, vector<1x4x256xf32>
    %3 = vector.shape_cast %2 : vector<1x4x256xf32> to vector<4x256xf32>
    %4 = vector.shape_cast %1 : vector<4x256xf32> to vector<1x4x256xf32>
    tpu.vector_store %arg8[%c0_2, %c0_3, %c0_4], %4 {strides = array<i32>} : memref<1x36x256xf32, #tpu.memory_space<vmem>>, vector<1x4x256xf32>,
    %c0_i32 = arith.constant 0 : i32
    %5 = arith.cmpi eq, %arg1, %c0_i32 : i32
    %6 = arith.extui %5 : i1 to i32
    %c0_i32_5 = arith.constant 0 : i32
    %7 = arith.cmpi ne, %6, %c0_i32_5 : i32
    scf.if %7 {
      %cst_17 = arith.constant 0.000000e+00 : f32
      %20 = vector.broadcast %cst_17 : f32 to vector<32x128xf32>
      %c0_18 = arith.constant 0 : index
      %c0_19 = arith.constant 0 : index
      %21 = vector.load %arg9[%c0_18, %c0_19] : memref<32x128xf32, #tpu.memory_space<vmem>>, vector<32x128xf32>
      tpu.vector_store %arg9[%c0_18, %c0_19], %20 {strides = array<i32>} : memref<32x128xf32, #tpu.memory_space<vmem>>, vector<32x128xf32>,
    } else {
    }
    %8 = arith.truncf %1 : vector<4x256xf32> to vector<4x256xbf16>
    %c0_6 = arith.constant 0 : index
    %c0_7 = arith.constant 0 : index
    %9 = vector.load %arg3[%c0_6, %c0_7] : memref<256x128xbf16, #tpu.memory_space<vmem>>, vector<256x128xbf16>
    %cst = arith.constant dense<0.000000e+00> : vector<4x128xf32>
    %10 = tpu.matmul %8, %9, %cst {dimension_numbers = #tpu.dot_dimension_numbers<[1], [0], [0], [1], [0, 0, 1, 1], [], []>} : vector<4x256xbf16>, vector<256x128xbf16>, vector<4x128xf32> -> vector<4x128xf32>
    %c0_8 = arith.constant 0 : index
    %c0_9 = arith.constant 0 : index
    %11 = vector.load %arg9[%c0_8, %c0_9] : memref<32x128xf32, #tpu.memory_space<vmem>>, vector<32x128xf32>
    %c0_10 = arith.constant 0 : index
    %c0_11 = arith.constant 0 : index
    %12 = vector.load %arg4[%c0_10, %c0_11] : memref<32x4xbf16, #tpu.memory_space<vmem>>, vector<32x4xbf16>
    %13 = arith.truncf %10 : vector<4x128xf32> to vector<4x128xbf16>
    %cst_12 = arith.constant dense<0.000000e+00> : vector<32x128xf32>
    %14 = tpu.matmul %12, %13, %cst_12 {dimension_numbers = #tpu.dot_dimension_numbers<[1], [0], [0], [1], [0, 0, 1, 1], [], []>} : vector<32x4xbf16>, vector<4x128xbf16>, vector<32x128xf32> -> vector<32x128xf32>
    %15 = arith.addf %11, %14 : vector<32x128xf32>
    %c0_13 = arith.constant 0 : index
    %c0_14 = arith.constant 0 : index
    %16 = vector.load %arg9[%c0_13, %c0_14] : memref<32x128xf32, #tpu.memory_space<vmem>>, vector<32x128xf32>
    tpu.vector_store %arg9[%c0_13, %c0_14], %15 {strides = array<i32>} : memref<32x128xf32, #tpu.memory_space<vmem>>, vector<32x128xf32>,
    %c0_i32_15 = arith.constant 0 : i32
    %17 = arith.cmpi eq, %arg1, %c0_i32_15 : i32
    %18 = arith.extui %17 : i1 to i32
    %c0_i32_16 = arith.constant 0 : i32
    %19 = arith.cmpi ne, %18, %c0_i32_16 : i32
    scf.if %19 {
      %c0_17 = arith.constant 0 : index
      %c0_18 = arith.constant 0 : index
      %20 = vector.load %arg9[%c0_17, %c0_18] : memref<32x128xf32, #tpu.memory_space<vmem>>, vector<32x128xf32>
      %c0_19 = arith.constant 0 : index
      %c0_20 = arith.constant 0 : index
      %21 = vector.load %arg5[%c0_19, %c0_20] : memref<32x1xf32, #tpu.memory_space<vmem>>, vector<32x1xf32>
      %22 = vector.broadcast %21 : vector<32x1xf32> to vector<32x128xf32>
      %23 = arith.addf %20, %22 : vector<32x128xf32>
      %cst_21 = arith.constant 0.000000e+00 : f32
      %24 = vector.broadcast %cst_21 : f32 to vector<32x128xf32>
      %25 = arith.maximumf %23, %24 : vector<32x128xf32>
      %c0_22 = arith.constant 0 : index
      %c0_23 = arith.constant 0 : index
      %26 = vector.load %arg6[%c0_22, %c0_23] : memref<32x128xf32, #tpu.memory_space<vmem>>, vector<32x128xf32>
      %27 = arith.mulf %25, %26 : vector<32x128xf32>
      %28 = arith.truncf %27 : vector<32x128xf32> to vector<32x128xbf16>
      %c0_24 = arith.constant 0 : index
      %c0_25 = arith.constant 0 : index
      %29 = vector.load %arg7[%c0_24, %c0_25] : memref<128x256xbf16, #tpu.memory_space<vmem>>, vector<128x256xbf16>
      %cst_26 = arith.constant dense<0.000000e+00> : vector<32x256xf32>
      %30 = tpu.matmul %28, %29, %cst_26 {dimension_numbers = #tpu.dot_dimension_numbers<[1], [0], [0], [1], [0, 0, 1, 1], [], []>} : vector<32x128xbf16>, vector<128x256xbf16>, vector<32x256xf32> -> vector<32x256xf32>
      %c0_27 = arith.constant 0 : index
      %c4 = arith.constant 4 : index
      %c0_28 = arith.constant 0 : index
      %31 = vector.load %arg8[%c0_27, %c4, %c0_28] : memref<1x36x256xf32, #tpu.memory_space<vmem>>, vector<1x32x256xf32>
      %32 = vector.shape_cast %31 : vector<1x32x256xf32> to vector<32x256xf32>
      %33 = vector.shape_cast %30 : vector<32x256xf32> to vector<1x32x256xf32>
      tpu.vector_store %arg8[%c0_27, %c4, %c0_28], %33 {strides = array<i32>} : memref<1x36x256xf32, #tpu.memory_space<vmem>>, vector<1x32x256xf32>,
    } else {
    }
    return
  }
  func.func @transform_0(%arg0: i32, %arg1: i32) -> (i32, i32, i32) {
    %c0_i32 = arith.constant 0 : i32
    %c0_i32_0 = arith.constant 0 : i32
    return %arg0, %arg1, %c0_i32 : i32, i32, i32
  }
  func.func @transform_1(%arg0: i32, %arg1: i32) -> (i32, i32) {
    %c0_i32 = arith.constant 0 : i32
    %c0_i32_0 = arith.constant 0 : i32
    %c0_i32_1 = arith.constant 0 : i32
    return %c0_i32, %c0_i32_0 : i32, i32
  }
  func.func @transform_2(%arg0: i32, %arg1: i32) -> (i32, i32) {
    %c0_i32 = arith.constant 0 : i32
    %c0_i32_0 = arith.constant 0 : i32
    return %c0_i32, %arg1 : i32, i32
  }
  func.func @transform_3(%arg0: i32, %arg1: i32) -> (i32, i32) {
    %c0_i32 = arith.constant 0 : i32
    %c0_i32_0 = arith.constant 0 : i32
    %c0_i32_1 = arith.constant 0 : i32
    return %c0_i32, %c0_i32_0 : i32, i32
  }
  func.func @transform_4(%arg0: i32, %arg1: i32) -> (i32, i32) {
    %c0_i32 = arith.constant 0 : i32
    %c0_i32_0 = arith.constant 0 : i32
    %c0_i32_1 = arith.constant 0 : i32
    return %c0_i32, %c0_i32_0 : i32, i32
  }
  func.func @transform_5(%arg0: i32, %arg1: i32) -> (i32, i32) {
    %c0_i32 = arith.constant 0 : i32
    %c0_i32_0 = arith.constant 0 : i32
    %c0_i32_1 = arith.constant 0 : i32
    return %c0_i32, %c0_i32_0 : i32, i32
  }
  func.func @transform_6(%arg0: i32, %arg1: i32) -> (i32, i32, i32) {
    %c0_i32 = arith.constant 0 : i32
    %c0_i32_0 = arith.constant 0 : i32
    %c0_i32_1 = arith.constant 0 : i32
    return %arg0, %c0_i32, %c0_i32_0 : i32, i32, i32
  }
}

</mosaic_0001>

<llo_original>
// kernel: tpu_custom_call.1
$region0: #{tpu_custom_call.1}
  #allocation0 [shape = 'u32[]', space=smem, size = 0x4, offset = 0x4, fixed_abs, tag = 'smem constant byte address 0x4 - core index']
  #allocation1 [shape = 'u32[72,128]{1,0:T(1,128)}', space=vmem, size = 0x9000, scoped, tag = 'internal scratch']
  #allocation2 [shape = 'f32[32,128]{1,0:T(8,128)}', space=vmem, size = 0x4000, scoped, tag = 'scratch operand']
  %s0 = inlined_call_operand.vmem [shape: f32[2,4,256], index: 0, kind: input, shape index: {}]
  %s1 = inlined_call_operand.hbm [shape: bf16[256,128], index: 1, kind: input, shape index: {}]
  %s2 = inlined_call_operand.vmem [shape: bf16[32,4], index: 2, kind: input, shape index: {}]
  %s3 = inlined_call_operand.vmem [shape: f32[32,1], index: 3, kind: input, shape index: {}]
  %s4 = inlined_call_operand.vmem [shape: f32[32,128], index: 4, kind: input, shape index: {}]
  %s5 = inlined_call_operand.hbm [shape: bf16[128,256], index: 5, kind: input, shape index: {}]
  %s6 = inlined_call_operand.vmem [shape: f32[2,36,256], index: 6, kind: output, shape index: {}]
  %s7 = sld [smem:[#allocation0]]
  $region73: #{tpu_custom_call.1} parent=0
    _
  %s9 = ssub.s32 1, %s7
  %s10 = scalar_select 0, %s9, %s7
  $region1: #{tpu_custom_call.1} parent=0
    #allocation3 [shape = 'u8[65536]{0}', space=vmem, size = 0x10000, scoped, tag = 'input window, operand 1, single buffered']
    #allocation4 [shape = 's32[2]{0}', space=sflag, size = 0x8, scoped, tag = 'scoped memory for tpu_custom_call.1']
    #allocation5 [shape = 'u8[65536]{0}', space=vmem, size = 0x10000, scoped, tag = 'input window, operand 5, single buffered']
    #allocation6 [shape = 's32[1]{0}', space=sflag, size = 0x4, scoped, tag = 'scoped memory for tpu_custom_call.1']
    %11 = vsyncpa [#allocation4], 0
    %12 = vsyncpa [#allocation6], 0
    loop: start=0, step=1, limit=4
    $region2: #{tpu_custom_call.1} parent=1 // loop_pre_header
      _
    $region3: #{tpu_custom_call.1} parent=1 // loop_header
      %s14 = sphi 0, %s18
      %p15 = scmp.ge.s32.totalorder %s14, 4
      %s21 = sphi 0, %s33
      %s22 = sphi 0, %s29
      %s23 = sphi 0, %s21
      %s24 = sphi 0, %s22
      %s25 = sphi 0, %s23
      %s26 = sphi 0, %s24
      %s38 = sphi 0, %s40
      %s41 = sphi 0, %s38
      %s42 = sphi 0, %s41
      %s58 = sphi 0, %s42
      %s62 = sphi 0, %s62
      %s64 = sphi 0, %s62
      %s65 = sphi 0, %s64
      %s79 = sphi 0, %s65
      %s85 = sphi 0, %s87
      %s88 = sphi 0, %s85
      %s89 = sphi 0, %s88
      %s105 = sphi 0, %s89
      %s109 = sphi 0, %s109
      %s111 = sphi 0, %s109
      %s112 = sphi 0, %s111
      %s126 = sphi 0, %s112
      %s130 = sphi 0, %s130
      %s132 = sphi 0, %s130
      %s133 = sphi 0, %s132
      %s147 = sphi 0, %s133
      %s151 = sphi 0, %s151
      %s153 = sphi 0, %s151
      %s154 = sphi 0, %s153
      %s168 = sphi 0, %s154
      %s174 = sphi 0, %s176
      %s177 = sphi 0, %s174
      %s178 = sphi 0, %s177
      %s194 = sphi 0, %s178
    $region4: #{tpu_custom_call.1} parent=1 // loop_header_branch
      %17 = sbr.rel (%p15) target = $region8
    $region5: #{tpu_custom_call.1} parent=1 // loop_body
      %s19 = ssub.s32 %s14, 1
      %s20 = ssub.s32 %s14, 2
      %s27 = sadd.s32 1, %s22
      %p28 = scmp.ge.s32.totalorder %s27, 1
      %s29 = scalar_select %p28, 0, %s27
      %s30 = sadd.s32 1, %s21
      %s31 = scalar_select %p28, %s30, %s21
      %p32 = scmp.ge.s32.totalorder %s31, 2
      %s33 = scalar_select %p32, 0, %s31
      %s34 = ssub.s32 %s21, %s33
      %s35 = ssub.s32 %s22, %s29
      %s36 = sor.u32 %s34, %s35
      %p37 = scmp.eq.s32.totalorder %s36, 0
      %s39 = sadd.s32 %s38, 1
      %s40 = scalar_select %p37, %s38, %s39
      %p43 = pneg %p37
      %p44 = scmp.eq.s32.totalorder %s14, 1
      %p45 = por %p43, %p44
      %p46 = scmp.ne.s32.totalorder %s38, %s41
      %p47 = scmp.eq.s32.totalorder %s14, 0
      %p48 = por %p46, %p47
      %p49 = scmp.ne.s32.totalorder %s38, %s41
      %p50 = scmp.eq.s32.totalorder %s19, 1
      %p51 = por %p49, %p50
      %p52 = scmp.ne.s32.totalorder %s41, %s42
      %p53 = scmp.eq.s32.totalorder %s19, 0
      %p54 = por %p52, %p53
      %p55 = scmp.ne.s32.totalorder %s41, %s42
      %p56 = scmp.eq.s32.totalorder %s20, 1
      %p57 = por %p55, %p56
      %p59 = scmp.ne.s32.totalorder %s42, %s58
      %p60 = scmp.eq.s32.totalorder %s20, 0
      %p61 = por %p59, %p60
      %s63 = sadd.s32 %s62, 1
      %p66 = scmp.eq.s32.totalorder %s14, 1
      %p67 = scmp.ne.s32.totalorder %s62, %s64
      %p68 = scmp.eq.s32.totalorder %s14, 0
      %p69 = por %p67, %p68
      %p70 = scmp.ne.s32.totalorder %s62, %s64
      %p71 = scmp.eq.s32.totalorder %s19, 1
      %p72 = por %p70, %p71
      %p73 = scmp.ne.s32.totalorder %s64, %s65
      %p74 = scmp.eq.s32.totalorder %s19, 0
      %p75 = por %p73, %p74
      %p76 = scmp.ne.s32.totalorder %s64, %s65
      %p77 = scmp.eq.s32.totalorder %s20, 1
      %p78 = por %p76, %p77
      %p80 = scmp.ne.s32.totalorder %s65, %s79
      %p81 = scmp.eq.s32.totalorder %s20, 0
      %p82 = por %p80, %p81
      %s83 = ssub.s32 %s22, %s29
      %p84 = scmp.eq.s32.totalorder %s83, 0
      %s86 = sadd.s32 %s85, 1
      %s87 = scalar_select %p84, %s85, %s86
      %p90 = pneg %p84
      %p91 = scmp.eq.s32.totalorder %s14, 1
      %p92 = por %p90, %p91
      %p93 = scmp.ne.s32.totalorder %s85, %s88
      %p94 = scmp.eq.s32.totalorder %s14, 0
      %p95 = por %p93, %p94
      %p96 = scmp.ne.s32.totalorder %s85, %s88
      %p97 = scmp.eq.s32.totalorder %s19, 1
      %p98 = por %p96, %p97
      %p99 = scmp.ne.s32.totalorder %s88, %s89
      %p100 = scmp.eq.s32.totalorder %s19, 0
      %p101 = por %p99, %p100
      %p102 = scmp.ne.s32.totalorder %s88, %s89
      %p103 = scmp.eq.s32.totalorder %s20, 1
      %p104 = por %p102, %p103
      %p106 = scmp.ne.s32.totalorder %s89, %s105
      %p107 = scmp.eq.s32.totalorder %s20, 0
      %p108 = por %p106, %p107
      %s110 = sadd.s32 %s109, 1
      %p113 = scmp.eq.s32.totalorder %s14, 1
      %p114 = scmp.ne.s32.totalorder %s109, %s111
      %p115 = scmp.eq.s32.totalorder %s14, 0
      %p116 = por %p114, %p115
      %p117 = scmp.ne.s32.totalorder %s109, %s111
      %p118 = scmp.eq.s32.totalorder %s19, 1
      %p119 = por %p117, %p118
      %p120 = scmp.ne.s32.totalorder %s111, %s112
      %p121 = scmp.eq.s32.totalorder %s19, 0
      %p122 = por %p120, %p121
      %p123 = scmp.ne.s32.totalorder %s111, %s112
      %p124 = scmp.eq.s32.totalorder %s20, 1
      %p125 = por %p123, %p124
      %p127 = scmp.ne.s32.totalorder %s112, %s126
      %p128 = scmp.eq.s32.totalorder %s20, 0
      %p129 = por %p127, %p128
      %s131 = sadd.s32 %s130, 1
      %p134 = scmp.eq.s32.totalorder %s14, 1
      %p135 = scmp.ne.s32.totalorder %s130, %s132
      %p136 = scmp.eq.s32.totalorder %s14, 0
      %p137 = por %p135, %p136
      %p138 = scmp.ne.s32.totalorder %s130, %s132
      %p139 = scmp.eq.s32.totalorder %s19, 1
      %p140 = por %p138, %p139
      %p141 = scmp.ne.s32.totalorder %s132, %s133
      %p142 = scmp.eq.s32.totalorder %s19, 0
      %p143 = por %p141, %p142
      %p144 = scmp.ne.s32.totalorder %s132, %s133
      %p145 = scmp.eq.s32.totalorder %s20, 1
      %p146 = por %p144, %p145
      %p148 = scmp.ne.s32.totalorder %s133, %s147
      %p149 = scmp.eq.s32.totalorder %s20, 0
      %p150 = por %p148, %p149
      %s152 = sadd.s32 %s151, 1
      %p155 = scmp.eq.s32.totalorder %s14, 1
      %p156 = scmp.ne.s32.totalorder %s151, %s153
      %p157 = scmp.eq.s32.totalorder %s14, 0
      %p158 = por %p156, %p157
      %p159 = scmp.ne.s32.totalorder %s151, %s153
      %p160 = scmp.eq.s32.totalorder %s19, 1
      %p161 = por %p159, %p160
      %p162 = scmp.ne.s32.totalorder %s153, %s154
      %p163 = scmp.eq.s32.totalorder %s19, 0
      %p164 = por %p162, %p163
      %p165 = scmp.ne.s32.totalorder %s153, %s154
      %p166 = scmp.eq.s32.totalorder %s20, 1
      %p167 = por %p165, %p166
      %p169 = scmp.ne.s32.totalorder %s154, %s168
      %p170 = scmp.eq.s32.totalorder %s20, 0
      %p171 = por %p169, %p170
      %s172 = ssub.s32 %s21, %s33
      %p173 = scmp.eq.s32.totalorder %s172, 0
      %s175 = sadd.s32 %s174, 1
      %s176 = scalar_select %p173, %s174, %s175
      %p179 = pneg %p173
      %p180 = scmp.eq.s32.totalorder %s14, 1
      %p181 = por %p179, %p180
      %p182 = scmp.ne.s32.totalorder %s174, %s177
      %p183 = scmp.eq.s32.totalorder %s14, 0
      %p184 = por %p182, %p183
      %p185 = scmp.ne.s32.totalorder %s174, %s177
      %p186 = scmp.eq.s32.totalorder %s19, 1
      %p187 = por %p185, %p186
      %p188 = scmp.ne.s32.totalorder %s177, %s178
      %p189 = scmp.eq.s32.totalorder %s19, 0
      %p190 = por %p188, %p189
      %p191 = scmp.ne.s32.totalorder %s177, %s178
      %p192 = scmp.eq.s32.totalorder %s20, 1
      %p193 = por %p191, %p192
      %p195 = scmp.ne.s32.totalorder %s178, %s194
      %p196 = scmp.eq.s32.totalorder %s20, 0
      %p197 = por %p195, %p196
      %p198 = scmp.le.s32.totalorder 1, %s14
      %p199 = scmp.lt.s32.totalorder %s14, 3
      %p200 = pnand %p198, %p199
      %p201 = pneg %p200
      // Predicated region
      $region9: #{tpu_custom_call.1} parent=5 // pred_check
        _
      $region10: #{tpu_custom_call.1} parent=5 // pred_check_branch
        %203 = sbr.rel (%p200) target = $region12
      $region11: #{tpu_custom_call.1} parent=5 // pred_region
        %s204 = ssub.s32 %s14, 1
        // Predicated region
        $region13: #{tpu_custom_call.1} parent=11 // pred_check
          %p205 = pneg %p75
        $region14: #{tpu_custom_call.1} parent=11 // pred_check_branch
          %207 = sbr.rel (%p205) target = $region16
        $region15: #{tpu_custom_call.1} parent=11 // pred_region
          %209 = vsyncadd [#allocation4], 0
          %s210 = sshll.u32 %s1, 4
          %s211 = int_to_ptr.hbm [resolvable:$true] %s210
          %s212 = sshll.u32 [#allocation3], 4
          %s213 = int_to_ptr.vmem [resolvable:$true] %s212
          %218 = dma.hbm_to_vmem [thread:$0]  %s211, 2048, %s213, [#allocation4], 64, 64, 4
        $region16: #{tpu_custom_call.1} parent=11 // pred_fallthru
          _
        // Predicated region
        $region17: #{tpu_custom_call.1} parent=11 // pred_check
          %p219 = pneg %p101
        $region18: #{tpu_custom_call.1} parent=11 // pred_check_branch
          %221 = sbr.rel (%p219) target = $region20
        $region19: #{tpu_custom_call.1} parent=11 // pred_region
          %p222 = scmp.lt.s32.totalorder %s24, 0
          %s223 = scalar_select %p222, %s24, 0
          %s224 = smul.addr %s223, 4
          %s225 = scalar_lea.vmem %s2, %s224
        $region20: #{tpu_custom_call.1} parent=11 // pred_fallthru
          _
        // Predicated region
        $region21: #{tpu_custom_call.1} parent=11 // pred_check
          %p226 = pneg %p122
        $region22: #{tpu_custom_call.1} parent=11 // pred_check_branch
          %228 = sbr.rel (%p226) target = $region24
        $region23: #{tpu_custom_call.1} parent=11 // pred_region
          _
        $region24: #{tpu_custom_call.1} parent=11 // pred_fallthru
          _
        // Predicated region
        $region25: #{tpu_custom_call.1} parent=11 // pred_check
          %p229 = pneg %p143
        $region26: #{tpu_custom_call.1} parent=11 // pred_check_branch
          %231 = sbr.rel (%p229) target = $region28
        $region27: #{tpu_custom_call.1} parent=11 // pred_region
          _
        $region28: #{tpu_custom_call.1} parent=11 // pred_fallthru
          _
        // Predicated region
        $region29: #{tpu_custom_call.1} parent=11 // pred_check
          %p232 = pneg %p164
        $region30: #{tpu_custom_call.1} parent=11 // pred_check_branch
          %234 = sbr.rel (%p232) target = $region32
        $region31: #{tpu_custom_call.1} parent=11 // pred_region
          %236 = vsyncadd [#allocation6], 0
          %s237 = sshll.u32 %s5, 4
          %s238 = int_to_ptr.hbm [resolvable:$true] %s237
          %s239 = sshll.u32 [#allocation5], 4
          %s240 = int_to_ptr.vmem [resolvable:$true] %s239
          %245 = dma.hbm_to_vmem [thread:$0]  %s238, 2048, %s240, [#allocation6], 128, 128, 8
        $region32: #{tpu_custom_call.1} parent=11 // pred_fallthru
          _
      $region12: #{tpu_custom_call.1} parent=5 // pred_fallthru
        _
      %p246 = scmp.lt.s32.totalorder %s14, 2
      // Predicated region
      $region33: #{tpu_custom_call.1} parent=5 // pred_check
        %p247 = pneg %p246
      $region34: #{tpu_custom_call.1} parent=5 // pred_check_branch
        %249 = sbr.rel (%p247) target = $region36
      $region35: #{tpu_custom_call.1} parent=5 // pred_region
        // Predicated region
        $region37: #{tpu_custom_call.1} parent=35 // pred_check
          %p250 = pneg %p48
        $region38: #{tpu_custom_call.1} parent=35 // pred_check_branch
          %252 = sbr.rel (%p250) target = $region40
        $region39: #{tpu_custom_call.1} parent=35 // pred_region
          %p253 = scmp.lt.s32.totalorder %s21, 1
          %s254 = scalar_select %p253, %s21, 1
          %p255 = scmp.lt.s32.totalorder %s22, 0
          %s256 = scalar_select %p255, %s22, 0
          %s257 = smul.addr %s256, 2
          %s258 = smul.addr %s254, 2
          %s259 = sadd.s32 %s257, %s258
          %s260 = smul.addr %s259, 4
          %s261 = scalar_lea.vmem %s0, %s260
        $region40: #{tpu_custom_call.1} parent=35 // pred_fallthru
          _
      $region36: #{tpu_custom_call.1} parent=5 // pred_fallthru
        _
      %p262 = scmp.le.s32.totalorder 1, %s14
      %p263 = scmp.lt.s32.totalorder %s14, 3
      %p264 = pnand %p262, %p263
      %p265 = pneg %p264
      // Predicated region
      $region41: #{tpu_custom_call.1} parent=5 // pred_check
        _
      $region42: #{tpu_custom_call.1} parent=5 // pred_check_branch
        %267 = sbr.rel (%p264) target = $region44
      $region43: #{tpu_custom_call.1} parent=5 // pred_region
        %s268 = ssub.s32 %s14, 1
        // Predicated region
        $region45: #{tpu_custom_call.1} parent=43 // pred_check
          %p269 = pneg %p75
        $region46: #{tpu_custom_call.1} parent=43 // pred_check_branch
          %271 = sbr.rel (%p269) target = $region48
        $region47: #{tpu_custom_call.1} parent=43 // pred_region
          %273 = dma.done [#allocation4], 2048
        $region48: #{tpu_custom_call.1} parent=43 // pred_fallthru
          _
        // Predicated region
        $region49: #{tpu_custom_call.1} parent=43 // pred_check
          %p274 = pneg %p164
        $region50: #{tpu_custom_call.1} parent=43 // pred_check_branch
          %276 = sbr.rel (%p274) target = $region52
        $region51: #{tpu_custom_call.1} parent=43 // pred_region
          %278 = dma.done [#allocation6], 2048
        $region52: #{tpu_custom_call.1} parent=43 // pred_fallthru
          _
        %p279 = scmp.lt.s32.totalorder %s23, 1
        %s280 = scalar_select %p279, %s23, 1
        %p281 = scmp.lt.s32.totalorder %s24, 0
        %s282 = scalar_select %p281, %s24, 0
        %s283 = smul.addr %s282, 2
        %s284 = smul.addr %s280, 2
        %s285 = sadd.s32 %s283, %s284
        %s286 = smul.addr %s285, 4
        %s287 = scalar_lea.vmem %s0, %s286
        %p288 = pneg %p54
        %p289 = pneg %p51
        %p290 = pneg %p75
        %p291 = pneg %p72
        %p292 = scmp.lt.s32.totalorder %s24, 0
        %s293 = scalar_select %p292, %s24, 0
        %s294 = smul.addr %s293, 4
        %s295 = scalar_lea.vmem %s2, %s294
        %p296 = pneg %p101
        %p297 = pneg %p98
        %p298 = pneg %p122
        %p299 = pneg %p119
        %p300 = pneg %p143
        %p301 = pneg %p140
        %p302 = pneg %p164
        %p303 = pneg %p161
        %p304 = pneg %p190
        %p305 = pneg %p187
        %p306 = scmp.lt.s32.totalorder %s23, 1
        %s307 = scalar_select %p306, %s23, 1
        %s308 = smul.addr %s307, 10
        %s309 = smul.addr %s308, 8
        %s310 = scalar_lea.vmem %s6, %s309
        %p311 = scmp.lt.s32.totalorder %s23, 1
        %s312 = scalar_select %p311, %s23, 1
        %p313 = scmp.lt.s32.totalorder %s24, 0
        %s314 = scalar_select %p313, %s24, 0
        %s315 = smul.addr %s314, 2
        %s316 = smul.addr %s312, 2
        %s317 = sadd.s32 %s315, %s316
        %s318 = smul.addr %s317, 4
        %s319 = scalar_lea.vmem %s0, %s318
        %p320 = scmp.lt.s32.totalorder %s24, 0
        %s321 = scalar_select %p320, %s24, 0
        %s322 = smul.addr %s321, 4
        %s323 = scalar_lea.vmem %s2, %s322
        %p324 = scmp.lt.s32.totalorder %s23, 1
        %s325 = scalar_select %p324, %s23, 1
        %s326 = smul.addr %s325, 10
        %s327 = smul.addr %s326, 8
        %s328 = scalar_lea.vmem %s6, %s327
        %v330 = vld [vmem:[%s319] sm:$0xff]
        %332 = vst [vmem:[#allocation1] ss:$2 sm:$0xff] %v330
        %v333 = vld.sshfl [vmem:[#allocation1] sm:$0xff pattern:$0x75316420]
        %v334 = vld.sshfl [vmem:[#allocation1 + $0x8] sm:$0xff pattern:$0x75316420]
        %337 = vst [vmem:[%s328] sm:$0xf] %v333
        %338 = vst [vmem:[%s328 + $0x8] sm:$0xf] %v334
        %p339 = scmp.eq.s32.totalorder %s24, 0
        // Predicated region
        $region53: #{tpu_custom_call.1} parent=43 // pred_check
          %p340 = pneg %p339
        $region54: #{tpu_custom_call.1} parent=43 // pred_check_branch
          %342 = sbr.rel (%p340) target = $region56
        $region55: #{tpu_custom_call.1} parent=43 // pred_region
          %343 = vst [vmem:[#allocation2] sm:$0xff] 0.0
          %344 = vst [vmem:[#allocation2 + $0x8] sm:$0xff] 0.0
          %345 = vst [vmem:[#allocation2 + $0x10] sm:$0xff] 0.0
          %346 = vst [vmem:[#allocation2 + $0x18] sm:$0xff] 0.0
        $region56: #{tpu_custom_call.1} parent=43 // pred_fallthru
          _
        %347 = vst [vmem:[#allocation1] ss:$2 sm:$0xff] %v330
        %v348 = vld.sshfl [vmem:[#allocation1] sm:$0xff pattern:$0x75316420]
        %v349 = vld.sshfl [vmem:[#allocation1 + $0x8] sm:$0xff pattern:$0x75316420]
        %v352 = vpack.c.bf16 %v348, %v348
        %v353 = vpack.c.bf16 %v349, %v349
        %v354 = vld [vmem:[#allocation3] sm:$0xf]
        %v355 = vld [vmem:[#allocation3 + $0x4] sm:$0xf]
        %v356 = vld [vmem:[#allocation3 + $0x8] sm:$0xf]
        %v357 = vld [vmem:[#allocation3 + $0xc] sm:$0xf]
        %v358 = vld [vmem:[#allocation3 + $0x10] sm:$0xf]
        %v359 = vld [vmem:[#allocation3 + $0x14] sm:$0xf]
        %v360 = vld [vmem:[#allocation3 + $0x18] sm:$0xf]
        %v361 = vld [vmem:[#allocation3 + $0x1c] sm:$0xf]
        %v362 = vld [vmem:[#allocation3 + $0x20] sm:$0xf]
        %v363 = vld [vmem:[#allocation3 + $0x24] sm:$0xf]
        %v364 = vld [vmem:[#allocation3 + $0x28] sm:$0xf]
        %v365 = vld [vmem:[#allocation3 + $0x2c] sm:$0xf]
        %v366 = vld [vmem:[#allocation3 + $0x30] sm:$0xf]
        %v367 = vld [vmem:[#allocation3 + $0x34] sm:$0xf]
        %v368 = vld [vmem:[#allocation3 + $0x38] sm:$0xf]
        %v369 = vld [vmem:[#allocation3 + $0x3c] sm:$0xf]
        %v370 = vld [vmem:[#allocation3 + $0x40] sm:$0xf]
        %v371 = vld [vmem:[#allocation3 + $0x44] sm:$0xf]
        %v372 = vld [vmem:[#allocation3 + $0x48] sm:$0xf]
        %v373 = vld [vmem:[#allocation3 + $0x4c] sm:$0xf]
        %v374 = vld [vmem:[#allocation3 + $0x50] sm:$0xf]
        %v375 = vld [vmem:[#allocation3 + $0x54] sm:$0xf]
        %v376 = vld [vmem:[#allocation3 + $0x58] sm:$0xf]
        %v377 = vld [vmem:[#allocation3 + $0x5c] sm:$0xf]
        %v378 = vld [vmem:[#allocation3 + $0x60] sm:$0xf]
        %v379 = vld [vmem:[#allocation3 + $0x64] sm:$0xf]
        %v380 = vld [vmem:[#allocation3 + $0x68] sm:$0xf]
        %v381 = vld [vmem:[#allocation3 + $0x6c] sm:$0xf]
        %v382 = vld [vmem:[#allocation3 + $0x70] sm:$0xf]
        %v383 = vld [vmem:[#allocation3 + $0x74] sm:$0xf]
        %v384 = vld [vmem:[#allocation3 + $0x78] sm:$0xf]
        %v385 = vld [vmem:[#allocation3 + $0x7c] sm:$0xf]
        %v418 = vunpack.c.l.b16 %v354
        %v419 = vunpack.c.l.b16 %v355
        %v420 = vunpack.c.l.b16 %v356
        %v421 = vunpack.c.l.b16 %v357
        %v422 = vunpack.c.l.b16 %v358
        %v423 = vunpack.c.l.b16 %v359
        %v424 = vunpack.c.l.b16 %v360
        %v425 = vunpack.c.l.b16 %v361
        %v426 = vunpack.c.l.b16 %v362
        %v427 = vunpack.c.l.b16 %v363
        %v428 = vunpack.c.l.b16 %v364
        %v429 = vunpack.c.l.b16 %v365
        %v430 = vunpack.c.l.b16 %v366
        %v431 = vunpack.c.l.b16 %v367
        %v432 = vunpack.c.l.b16 %v368
        %v433 = vunpack.c.l.b16 %v369
        %v434 = vunpack.c.l.b16 %v370
        %v435 = vunpack.c.l.b16 %v371
        %v436 = vunpack.c.l.b16 %v372
        %v437 = vunpack.c.l.b16 %v373
        %v438 = vunpack.c.l.b16 %v374
        %v439 = vunpack.c.l.b16 %v375
        %v440 = vunpack.c.l.b16 %v376
        %v441 = vunpack.c.l.b16 %v377
        %v442 = vunpack.c.l.b16 %v378
        %v443 = vunpack.c.l.b16 %v379
        %v444 = vunpack.c.l.b16 %v380
        %v445 = vunpack.c.l.b16 %v381
        %v446 = vunpack.c.l.b16 %v382
        %v447 = vunpack.c.l.b16 %v383
        %v448 = vunpack.c.l.b16 %v384
        %v449 = vunpack.c.l.b16 %v385
        %v450 = vpack.c.b16 %v419, %v418
        %v451 = vpack.c.b16 %v421, %v420
        %v452 = vpack.c.b16 %v423, %v422
        %v453 = vpack.c.b16 %v425, %v424
        %v454 = vpack.c.b16 %v427, %v426
        %v455 = vpack.c.b16 %v429, %v428
        %v456 = vpack.c.b16 %v431, %v430
        %v457 = vpack.c.b16 %v433, %v432
        %v458 = vpack.c.b16 %v435, %v434
        %v459 = vpack.c.b16 %v437, %v436
        %v460 = vpack.c.b16 %v439, %v438
        %v461 = vpack.c.b16 %v441, %v440
        %v462 = vpack.c.b16 %v443, %v442
        %v463 = vpack.c.b16 %v445, %v444
        %v464 = vpack.c.b16 %v447, %v446
        %v465 = vpack.c.b16 %v449, %v448
        %482 = vmatpush.bf16.msra.mxu0 %v457
        %483 = vmatpush.bf16.msra.mxu0 %v456
        %484 = vmatpush.bf16.msra.mxu0 %v455
        %485 = vmatpush.bf16.msra.mxu0 %v454
        %486 = vmatpush.bf16.msra.mxu0 %v453
        %487 = vmatpush.bf16.msra.mxu0 %v452
        %488 = vmatpush.bf16.msra.mxu0 %v451
        %489 = vmatpush.bf16.msra.mxu0 %v450
        %490 = vmatmul.bf16.gmra.mxu0 %v352
        %v491 = vpop.f32.mrf.mxu0
        %v492 = vadd.f32 0.0, %v491
        %v493 = vpop.f32.mrf.mxu0
        %494 = vdwg.mxu0
        %495 = vmatpush.bf16.msra.mxu0 %v465
        %496 = vmatpush.bf16.msra.mxu0 %v464
        %497 = vmatpush.bf16.msra.mxu0 %v463
        %498 = vmatpush.bf16.msra.mxu0 %v462
        %499 = vmatpush.bf16.msra.mxu0 %v461
        %500 = vmatpush.bf16.msra.mxu0 %v460
        %501 = vmatpush.bf16.msra.mxu0 %v459
        %502 = vmatpush.bf16.msra.mxu0 %v458
        %503 = vmatmul.bf16.gmra.mxu0 %v353
        %v504 = vpop.f32.mrf.mxu0
        %v505 = vadd.f32 %v492, %v504
        %v506 = vpop.f32.mrf.mxu0
        %507 = vdwg.mxu0
        %v508 = vld [vmem:[#allocation2] sm:$0xff]
        %v509 = vld [vmem:[#allocation2 + $0x8] sm:$0xff]
        %v510 = vld [vmem:[#allocation2 + $0x10] sm:$0xff]
        %v511 = vld [vmem:[#allocation2 + $0x18] sm:$0xff]
        %v512 = vld [vmem:[%s323] sm:$0xf]
        %v513 = vld [vmem:[%s323 + $0x4] sm:$0xf]
        %v514 = vld [vmem:[%s323 + $0x8] sm:$0xf]
        %v515 = vld [vmem:[%s323 + $0xc] sm:$0xf]
        %v516 = vpack.c.bf16 %v505, %v505
        %v521 = vunpack.c.l.b16 %v512
        %v522 = vunpack.c.l.b16 %v513
        %v523 = vunpack.c.l.b16 %v514
        %v524 = vunpack.c.l.b16 %v515
        %v525 = vpack.c.b16 %v522, %v521
        %v526 = vpack.c.b16 %v524, %v523
        %vm527 = vcmask 31744
        %v529 = vsel %vm527, %v525, 0
        %v532 = vsel %vm527, %v526, 0
        %vm534 = vcmask 1041408
        %v536 = vsel %vm534, %v516, 0
        %538 = vmatpush.bf16.msra.mxu0 0
        %539 = vmatpush.bf16.msra.mxu0 0
        %540 = vmatpush.bf16.msra.mxu0 0
        %541 = vmatpush.bf16.msra.mxu0 0
        %542 = vmatpush.bf16.msra.mxu0 0
        %543 = vmatpush.bf16.msra.mxu0 0
        %544 = vmatpush.bf16.msra.mxu0 0
        %545 = vmatpush.bf16.msra.mxu0 %v536
        %546 = vmatmul.bf16.gmra.mxu0 %v529
        %v547 = vpop.f32.mrf.mxu0
        %v548 = vadd.f32 0.0, %v547
        %v549 = vpop.f32.mrf.mxu0
        %v550 = vadd.f32 0.0, %v549
        %551 = vmatmul.bf16.gmra.mxu0 %v532
        %v552 = vpop.f32.mrf.mxu0
        %v553 = vadd.f32 0.0, %v552
        %v554 = vpop.f32.mrf.mxu0
        %v555 = vadd.f32 0.0, %v554
        %556 = vdwg.mxu0
        %v557 = vadd.f32 %v508, %v548
        %v558 = vadd.f32 %v509, %v550
        %v559 = vadd.f32 %v510, %v553
        %v560 = vadd.f32 %v511, %v555
        %561 = vst [vmem:[#allocation2] sm:$0xff] %v557
        %562 = vst [vmem:[#allocation2 + $0x8] sm:$0xff] %v558
        %563 = vst [vmem:[#allocation2 + $0x10] sm:$0xff] %v559
        %564 = vst [vmem:[#allocation2 + $0x18] sm:$0xff] %v560
        // Predicated region
        $region57: #{tpu_custom_call.1} parent=43 // pred_check
          %p565 = pneg %p339
        $region58: #{tpu_custom_call.1} parent=43 // pred_check_branch
          %567 = sbr.rel (%p565) target = $region60
        $region59: #{tpu_custom_call.1} parent=43 // pred_region
          %v568 = vld [vmem:[#allocation2] sm:$0xff]
          %v569 = vld [vmem:[#allocation2 + $0x8] sm:$0xff]
          %v570 = vld [vmem:[#allocation2 + $0x10] sm:$0xff]
          %v571 = vld [vmem:[#allocation2 + $0x18] sm:$0xff]
          %v572 = vld [vmem:[%s3] sm:$0xff]
          %v573 = vld [vmem:[%s3 + $0x8] sm:$0xff]
          %v574 = vld [vmem:[%s3 + $0x10] sm:$0xff]
          %v575 = vld [vmem:[%s3 + $0x18] sm:$0xff]
          %577 = vset.pattern.permute.xlu0 0
          %578 = vperm.xlu0 %577, %v572
          %v579 = vpop.permute.xlu0 %578
          %582 = vset.pattern.permute.xlu0 0
          %583 = vperm.xlu0 %582, %v573
          %v584 = vpop.permute.xlu0 %583
          %587 = vset.pattern.permute.xlu0 0
          %588 = vperm.xlu0 %587, %v574
          %v589 = vpop.permute.xlu0 %588
          %592 = vset.pattern.permute.xlu0 0
          %593 = vperm.xlu0 %592, %v575
          %v594 = vpop.permute.xlu0 %593
          %v596 = vadd.f32 %v568, %v579
          %v597 = vadd.f32 %v569, %v584
          %v598 = vadd.f32 %v570, %v589
          %v599 = vadd.f32 %v571, %v594
          %v600 = vmax.f32 %v596, 0.0
          %v601 = vmax.f32 %v597, 0.0
          %v602 = vmax.f32 %v598, 0.0
          %v603 = vmax.f32 %v599, 0.0
          %v604 = vld [vmem:[%s4] sm:$0xff]
          %v605 = vld [vmem:[%s4 + $0x8] sm:$0xff]
          %v606 = vld [vmem:[%s4 + $0x10] sm:$0xff]
          %v607 = vld [vmem:[%s4 + $0x18] sm:$0xff]
          %v608 = vmul.f32 %v600, %v604
          %v609 = vmul.f32 %v601, %v605
          %v610 = vmul.f32 %v602, %v606
          %v611 = vmul.f32 %v603, %v607
          %v612 = vpack.c.bf16 %v609, %v608
          %v613 = vpack.c.bf16 %v611, %v610
          %v614 = vld [vmem:[#allocation5] sm:$0xff]
          %v615 = vld [vmem:[#allocation5 + $0x8] sm:$0xff]
          %v616 = vld [vmem:[#allocation5 + $0x10] sm:$0xff]
          %v617 = vld [vmem:[#allocation5 + $0x18] sm:$0xff]
          %v618 = vld [vmem:[#allocation5 + $0x20] sm:$0xff]
          %v619 = vld [vmem:[#allocation5 + $0x28] sm:$0xff]
          %v620 = vld [vmem:[#allocation5 + $0x30] sm:$0xff]
          %v621 = vld [vmem:[#allocation5 + $0x38] sm:$0xff]
          %v622 = vld [vmem:[#allocation5 + $0x40] sm:$0xff]
          %v623 = vld [vmem:[#allocation5 + $0x48] sm:$0xff]
          %v624 = vld [vmem:[#allocation5 + $0x50] sm:$0xff]
          %v625 = vld [vmem:[#allocation5 + $0x58] sm:$0xff]
          %v626 = vld [vmem:[#allocation5 + $0x60] sm:$0xff]
          %v627 = vld [vmem:[#allocation5 + $0x68] sm:$0xff]
          %v628 = vld [vmem:[#allocation5 + $0x70] sm:$0xff]
          %v629 = vld [vmem:[#allocation5 + $0x78] sm:$0xff]
          %v646 = vunpack.c.l.b16 %v614
          %v647 = vunpack.c.h.b16 %v614
          %v648 = vunpack.c.l.b16 %v615
          %v649 = vunpack.c.h.b16 %v615
          %v650 = vunpack.c.l.b16 %v616
          %v651 = vunpack.c.h.b16 %v616
          %v652 = vunpack.c.l.b16 %v617
          %v653 = vunpack.c.h.b16 %v617
          %v654 = vunpack.c.l.b16 %v618
          %v655 = vunpack.c.h.b16 %v618
          %v656 = vunpack.c.l.b16 %v619
          %v657 = vunpack.c.h.b16 %v619
          %v658 = vunpack.c.l.b16 %v620
          %v659 = vunpack.c.h.b16 %v620
          %v660 = vunpack.c.l.b16 %v621
          %v661 = vunpack.c.h.b16 %v621
          %v662 = vunpack.c.l.b16 %v622
          %v663 = vunpack.c.h.b16 %v622
          %v664 = vunpack.c.l.b16 %v623
          %v665 = vunpack.c.h.b16 %v623
          %v666 = vunpack.c.l.b16 %v624
          %v667 = vunpack.c.h.b16 %v624
          %v668 = vunpack.c.l.b16 %v625
          %v669 = vunpack.c.h.b16 %v625
          %v670 = vunpack.c.l.b16 %v626
          %v671 = vunpack.c.h.b16 %v626
          %v672 = vunpack.c.l.b16 %v627
          %v673 = vunpack.c.h.b16 %v627
          %v674 = vunpack.c.l.b16 %v628
          %v675 = vunpack.c.h.b16 %v628
          %v676 = vunpack.c.l.b16 %v629
          %v677 = vunpack.c.h.b16 %v629
          %v678 = vpack.c.b16 %v648, %v646
          %v679 = vpack.c.b16 %v649, %v647
          %v680 = vpack.c.b16 %v652, %v650
          %v681 = vpack.c.b16 %v653, %v651
          %v682 = vpack.c.b16 %v656, %v654
          %v683 = vpack.c.b16 %v657, %v655
          %v684 = vpack.c.b16 %v660, %v658
          %v685 = vpack.c.b16 %v661, %v659
          %v686 = vpack.c.b16 %v664, %v662
          %v687 = vpack.c.b16 %v665, %v663
          %v688 = vpack.c.b16 %v668, %v666
          %v689 = vpack.c.b16 %v669, %v667
          %v690 = vpack.c.b16 %v672, %v670
          %v691 = vpack.c.b16 %v673, %v671
          %v692 = vpack.c.b16 %v676, %v674
          %v693 = vpack.c.b16 %v677, %v675
          %710 = vmatpush.bf16.msra.mxu0 %v692
          %711 = vmatpush.bf16.msra.mxu0 %v690
          %712 = vmatpush.bf16.msra.mxu0 %v688
          %713 = vmatpush.bf16.msra.mxu0 %v686
          %714 = vmatpush.bf16.msra.mxu0 %v684
          %715 = vmatpush.bf16.msra.mxu0 %v682
          %716 = vmatpush.bf16.msra.mxu0 %v680
          %717 = vmatpush.bf16.msra.mxu0 %v678
          %718 = vmatmul.bf16.gmra.mxu0 %v612
          %v719 = vpop.f32.mrf.mxu0
          %v720 = vadd.f32 0.0, %v719
          %v721 = vpop.f32.mrf.mxu0
          %v722 = vadd.f32 0.0, %v721
          %723 = vmatmul.bf16.gmra.mxu0 %v613
          %v724 = vpop.f32.mrf.mxu0
          %v725 = vadd.f32 0.0, %v724
          %v726 = vpop.f32.mrf.mxu0
          %v727 = vadd.f32 0.0, %v726
          %728 = vdwg.mxu0
          %729 = vmatpush.bf16.msra.mxu0 %v693
          %730 = vmatpush.bf16.msra.mxu0 %v691
          %731 = vmatpush.bf16.msra.mxu0 %v689
          %732 = vmatpush.bf16.msra.mxu0 %v687
          %733 = vmatpush.bf16.msra.mxu0 %v685
          %734 = vmatpush.bf16.msra.mxu0 %v683
          %735 = vmatpush.bf16.msra.mxu0 %v681
          %736 = vmatpush.bf16.msra.mxu0 %v679
          %737 = vmatmul.bf16.gmra.mxu0 %v612
          %v738 = vpop.f32.mrf.mxu0
          %v739 = vadd.f32 0.0, %v738
          %v740 = vpop.f32.mrf.mxu0
          %v741 = vadd.f32 0.0, %v740
          %742 = vmatmul.bf16.gmra.mxu0 %v613
          %v743 = vpop.f32.mrf.mxu0
          %v744 = vadd.f32 0.0, %v743
          %v745 = vpop.f32.mrf.mxu0
          %v746 = vadd.f32 0.0, %v745
          %747 = vdwg.mxu0
          %vm756 = vcmask 1043456
          %v757 = vrot.slane %v720, 4
          %v758 = vrot.slane %v739, 4
          %v759 = vrot.slane %v722, 4
          %v760 = vsel %vm756, %v757, %v759
          %v761 = vrot.slane %v741, 4
          %v762 = vsel %vm756, %v758, %v761
          %v763 = vrot.slane %v725, 4
          %v764 = vsel %vm756, %v759, %v763
          %v765 = vrot.slane %v744, 4
          %v766 = vsel %vm756, %v761, %v765
          %v767 = vrot.slane %v727, 4
          %v768 = vsel %vm756, %v763, %v767
          %v769 = vrot.slane %v746, 4
          %v770 = vsel %vm756, %v765, %v769
          %781 = vst [vmem:[%s328] sm:$0xf0] %v757
          %782 = vst [vmem:[%s328 + $0x8] sm:$0xf0] %v758
          %783 = vst [vmem:[%s328 + $0x10] sm:$0xff] %v760
          %784 = vst [vmem:[%s328 + $0x18] sm:$0xff] %v762
          %785 = vst [vmem:[%s328 + $0x20] sm:$0xff] %v764
          %786 = vst [vmem:[%s328 + $0x28] sm:$0xff] %v766
          %787 = vst [vmem:[%s328 + $0x30] sm:$0xff] %v768
          %788 = vst [vmem:[%s328 + $0x38] sm:$0xff] %v770
          %789 = vst [vmem:[%s328 + $0x40] sm:$0xf] %v767
          %790 = vst [vmem:[%s328 + $0x48] sm:$0xf] %v769
        $region60: #{tpu_custom_call.1} parent=43 // pred_fallthru
          _
        %p791 = scmp.lt.s32.totalorder %s23, 1
        %s792 = scalar_select %p791, %s23, 1
        %s793 = smul.addr %s792, 10
        %s794 = smul.addr %s793, 8
        %s795 = scalar_lea.vmem %s6, %s794
        // Predicated region
        $region61: #{tpu_custom_call.1} parent=43 // pred_check
          %p796 = pneg %p187
        $region62: #{tpu_custom_call.1} parent=43 // pred_check_branch
          %798 = sbr.rel (%p796) target = $region64
        $region63: #{tpu_custom_call.1} parent=43 // pred_region
          _
        $region64: #{tpu_custom_call.1} parent=43 // pred_fallthru
          _
      $region44: #{tpu_custom_call.1} parent=5 // pred_fallthru
        _
      %p799 = scmp.le.s32.totalorder 2, %s14
      // Predicated region
      $region65: #{tpu_custom_call.1} parent=5 // pred_check
        %p800 = pneg %p799
      $region66: #{tpu_custom_call.1} parent=5 // pred_check_branch
        %802 = sbr.rel (%p800) target = $region68
      $region67: #{tpu_custom_call.1} parent=5 // pred_region
        %s803 = ssub.s32 %s14, 2
        // Predicated region
        $region69: #{tpu_custom_call.1} parent=67 // pred_check
          %p804 = pneg %p193
        $region70: #{tpu_custom_call.1} parent=67 // pred_check_branch
          %806 = sbr.rel (%p804) target = $region72
        $region71: #{tpu_custom_call.1} parent=67 // pred_region
          %p807 = scmp.lt.s32.totalorder %s25, 1
          %s808 = scalar_select %p807, %s25, 1
          %s809 = smul.addr %s808, 10
          %s810 = smul.addr %s809, 8
          %s811 = scalar_lea.vmem %s6, %s810
        $region72: #{tpu_custom_call.1} parent=67 // pred_fallthru
          _
      $region68: #{tpu_custom_call.1} parent=5 // pred_fallthru
        _
    $region6: #{tpu_custom_call.1} parent=1 // loop_footer
      %s18 = sadd.s32 1, %s14
    $region7: #{tpu_custom_call.1} parent=1 // loop_footer_branch
      %13 = sbr.rel target = $region3
    $region8: #{tpu_custom_call.1} parent=1 // loop_exit
      _
    %812 = vsyncpa [#allocation4], 1
    %s813 = scalar_lea.sflag [#allocation4], 1
    %814 = vsyncpa %s813, 1
    %815 = vsyncpa [#allocation6], 1

// kernel: tpu_custom_call.1
$region0: #{tpu_custom_call.1}
  #allocation0 [shape = 'u32[]', space=smem, size = 0x4, offset = 0x4, fixed_abs, tag = 'smem constant byte address 0x4 - core index']
  #allocation1 [shape = 'u32[72,128]{1,0:T(1,128)}', space=vmem, size = 0x9000, scoped, tag = 'internal scratch']
  #allocation2 [shape = 'f32[32,128]{1,0:T(8,128)}', space=vmem, size = 0x4000, scoped, tag = 'scratch operand']
  %s0 = inlined_call_operand.vmem [shape: f32[2,4,256], index: 0, kind: input, shape index: {}]
  %s1 = inlined_call_operand.hbm [shape: bf16[256,128], index: 1, kind: input, shape index: {}]
  %s2 = inlined_call_operand.vmem [shape: bf16[32,4], index: 2, kind: input, shape index: {}]
  %s3 = inlined_call_operand.vmem [shape: f32[32,1], index: 3, kind: input, shape index: {}]
  %s4 = inlined_call_operand.vmem [shape: f32[32,128], index: 4, kind: input, shape index: {}]
  %s5 = inlined_call_operand.hbm [shape: bf16[128,256], index: 5, kind: input, shape index: {}]
  %s6 = inlined_call_operand.vmem [shape: f32[2,36,256], index: 6, kind: output, shape index: {}]
  %s7 = sld [smem:[#allocation0]]
  $region73: #{tpu_custom_call.1} parent=0
    _
  %s9 = ssub.s32 1, %s7
  %s10 = scalar_select 0, %s9, %s7
  $region1: #{tpu_custom_call.1} parent=0
    #allocation3 [shape = 'u8[65536]{0}', space=vmem, size = 0x10000, scoped, tag = 'input window, operand 1, single buffered']
    #allocation4 [shape = 's32[2]{0}', space=sflag, size = 0x8, scoped, tag = 'scoped memory for tpu_custom_call.1']
    #allocation5 [shape = 'u8[65536]{0}', space=vmem, size = 0x10000, scoped, tag = 'input window, operand 5, single buffered']
    #allocation6 [shape = 's32[1]{0}', space=sflag, size = 0x4, scoped, tag = 'scoped memory for tpu_custom_call.1']
    %11 = vsyncpa [#allocation4], 0
    %12 = vsyncpa [#allocation6], 0
    loop: start=0, step=1, limit=4
    $region2: #{tpu_custom_call.1} parent=1 // loop_pre_header
      _
    $region3: #{tpu_custom_call.1} parent=1 // loop_header
      %s14 = sphi 0, %s18
      %p15 = scmp.ge.s32.totalorder %s14, 4
      %s21 = sphi 0, %s33
      %s22 = sphi 0, %s29
      %s23 = sphi 0, %s21
      %s24 = sphi 0, %s22
      %s25 = sphi 0, %s23
      %s26 = sphi 0, %s24
      %s38 = sphi 0, %s40
      %s41 = sphi 0, %s38
      %s42 = sphi 0, %s41
      %s58 = sphi 0, %s42
      %s62 = sphi 0, %s62
      %s64 = sphi 0, %s62
      %s65 = sphi 0, %s64
      %s79 = sphi 0, %s65
      %s85 = sphi 0, %s87
      %s88 = sphi 0, %s85
      %s89 = sphi 0, %s88
      %s105 = sphi 0, %s89
      %s109 = sphi 0, %s109
      %s111 = sphi 0, %s109
      %s112 = sphi 0, %s111
      %s126 = sphi 0, %s112
      %s130 = sphi 0, %s130
      %s132 = sphi 0, %s130
      %s133 = sphi 0, %s132
      %s147 = sphi 0, %s133
      %s151 = sphi 0, %s151
      %s153 = sphi 0, %s151
      %s154 = sphi 0, %s153
      %s168 = sphi 0, %s154
      %s174 = sphi 0, %s176
      %s177 = sphi 0, %s174
      %s178 = sphi 0, %s177
      %s194 = sphi 0, %s178
    $region4: #{tpu_custom_call.1} parent=1 // loop_header_branch
      %17 = sbr.rel (%p15) target = $region8
    $region5: #{tpu_custom_call.1} parent=1 // loop_body
      %s19 = ssub.s32 %s14, 1
      %s20 = ssub.s32 %s14, 2
      %s27 = sadd.s32 1, %s22
      %p28 = scmp.ge.s32.totalorder %s27, 1
      %s29 = scalar_select %p28, 0, %s27
      %s30 = sadd.s32 1, %s21
      %s31 = scalar_select %p28, %s30, %s21
      %p32 = scmp.ge.s32.totalorder %s31, 2
      %s33 = scalar_select %p32, 0, %s31
      %s34 = ssub.s32 %s21, %s33
      %s35 = ssub.s32 %s22, %s29
      %s36 = sor.u32 %s34, %s35
      %p37 = scmp.eq.s32.totalorder %s36, 0
      %s39 = sadd.s32 %s38, 1
      %s40 = scalar_select %p37, %s38, %s39
      %p43 = pneg %p37
      %p44 = scmp.eq.s32.totalorder %s14, 1
      %p45 = por %p43, %p44
      %p46 = scmp.ne.s32.totalorder %s38, %s41
      %p47 = scmp.eq.s32.totalorder %s14, 0
      %p48 = por %p46, %p47
      %p49 = scmp.ne.s32.totalorder %s38, %s41
      %p50 = scmp.eq.s32.totalorder %s19, 1
      %p51 = por %p49, %p50
      %p52 = scmp.ne.s32.totalorder %s41, %s42
      %p53 = scmp.eq.s32.totalorder %s19, 0
      %p54 = por %p52, %p53
      %p55 = scmp.ne.s32.totalorder %s41, %s42
      %p56 = scmp.eq.s32.totalorder %s20, 1
      %p57 = por %p55, %p56
      %p59 = scmp.ne.s32.totalorder %s42, %s58
      %p60 = scmp.eq.s32.totalorder %s20, 0
      %p61 = por %p59, %p60
      %s63 = sadd.s32 %s62, 1
      %p66 = scmp.eq.s32.totalorder %s14, 1
      %p67 = scmp.ne.s32.totalorder %s62, %s64
      %p68 = scmp.eq.s32.totalorder %s14, 0
      %p69 = por %p67, %p68
      %p70 = scmp.ne.s32.totalorder %s62, %s64
      %p71 = scmp.eq.s32.totalorder %s19, 1
      %p72 = por %p70, %p71
      %p73 = scmp.ne.s32.totalorder %s64, %s65
      %p74 = scmp.eq.s32.totalorder %s19, 0
      %p75 = por %p73, %p74
      %p76 = scmp.ne.s32.totalorder %s64, %s65
      %p77 = scmp.eq.s32.totalorder %s20, 1
      %p78 = por %p76, %p77
      %p80 = scmp.ne.s32.totalorder %s65, %s79
      %p81 = scmp.eq.s32.totalorder %s20, 0
      %p82 = por %p80, %p81
      %s83 = ssub.s32 %s22, %s29
      %p84 = scmp.eq.s32.totalorder %s83, 0
      %s86 = sadd.s32 %s85, 1
      %s87 = scalar_select %p84, %s85, %s86
      %p90 = pneg %p84
      %p91 = scmp.eq.s32.totalorder %s14, 1
      %p92 = por %p90, %p91
      %p93 = scmp.ne.s32.totalorder %s85, %s88
      %p94 = scmp.eq.s32.totalorder %s14, 0
      %p95 = por %p93, %p94
      %p96 = scmp.ne.s32.totalorder %s85, %s88
      %p97 = scmp.eq.s32.totalorder %s19, 1
      %p98 = por %p96, %p97
      %p99 = scmp.ne.s32.totalorder %s88, %s89
      %p100 = scmp.eq.s32.totalorder %s19, 0
      %p101 = por %p99, %p100
      %p102 = scmp.ne.s32.totalorder %s88, %s89
      %p103 = scmp.eq.s32.totalorder %s20, 1
      %p104 = por %p102, %p103
      %p106 = scmp.ne.s32.totalorder %s89, %s105
      %p107 = scmp.eq.s32.totalorder %s20, 0
      %p108 = por %p106, %p107
      %s110 = sadd.s32 %s109, 1
      %p113 = scmp.eq.s32.totalorder %s14, 1
      %p114 = scmp.ne.s32.totalorder %s109, %s111
      %p115 = scmp.eq.s32.totalorder %s14, 0
      %p116 = por %p114, %p115
      %p117 = scmp.ne.s32.totalorder %s109, %s111
      %p118 = scmp.eq.s32.totalorder %s19, 1
      %p119 = por %p117, %p118
      %p120 = scmp.ne.s32.totalorder %s111, %s112
      %p121 = scmp.eq.s32.totalorder %s19, 0
      %p122 = por %p120, %p121
      %p123 = scmp.ne.s32.totalorder %s111, %s112
      %p124 = scmp.eq.s32.totalorder %s20, 1
      %p125 = por %p123, %p124
      %p127 = scmp.ne.s32.totalorder %s112, %s126
      %p128 = scmp.eq.s32.totalorder %s20, 0
      %p129 = por %p127, %p128
      %s131 = sadd.s32 %s130, 1
      %p134 = scmp.eq.s32.totalorder %s14, 1
      %p135 = scmp.ne.s32.totalorder %s130, %s132
      %p136 = scmp.eq.s32.totalorder %s14, 0
      %p137 = por %p135, %p136
      %p138 = scmp.ne.s32.totalorder %s130, %s132
      %p139 = scmp.eq.s32.totalorder %s19, 1
      %p140 = por %p138, %p139
      %p141 = scmp.ne.s32.totalorder %s132, %s133
      %p142 = scmp.eq.s32.totalorder %s19, 0
      %p143 = por %p141, %p142
      %p144 = scmp.ne.s32.totalorder %s132, %s133
      %p145 = scmp.eq.s32.totalorder %s20, 1
      %p146 = por %p144, %p145
      %p148 = scmp.ne.s32.totalorder %s133, %s147
      %p149 = scmp.eq.s32.totalorder %s20, 0
      %p150 = por %p148, %p149
      %s152 = sadd.s32 %s151, 1
      %p155 = scmp.eq.s32.totalorder %s14, 1
      %p156 = scmp.ne.s32.totalorder %s151, %s153
      %p157 = scmp.eq.s32.totalorder %s14, 0
      %p158 = por %p156, %p157
      %p159 = scmp.ne.s32.totalorder %s151, %s153
      %p160 = scmp.eq.s32.totalorder %s19, 1
      %p161 = por %p159, %p160
      %p162 = scmp.ne.s32.totalorder %s153, %s154
      %p163 = scmp.eq.s32.totalorder %s19, 0
      %p164 = por %p162, %p163
      %p165 = scmp.ne.s32.totalorder %s153, %s154
      %p166 = scmp.eq.s32.totalorder %s20, 1
      %p167 = por %p165, %p166
      %p169 = scmp.ne.s32.totalorder %s154, %s168
      %p170 = scmp.eq.s32.totalorder %s20, 0
      %p171 = por %p169, %p170
      %s172 = ssub.s32 %s21, %s33
      %p173 = scmp.eq.s32.totalorder %s172, 0
      %s175 = sadd.s32 %s174, 1
      %s176 = scalar_select %p173, %s174, %s175
      %p179 = pneg %p173
      %p180 = scmp.eq.s32.totalorder %s14, 1
      %p181 = por %p179, %p180
      %p182 = scmp.ne.s32.totalorder %s174, %s177
      %p183 = scmp.eq.s32.totalorder %s14, 0
      %p184 = por %p182, %p183
      %p185 = scmp.ne.s32.totalorder %s174, %s177
      %p186 = scmp.eq.s32.totalorder %s19, 1
      %p187 = por %p185, %p186
      %p188 = scmp.ne.s32.totalorder %s177, %s178
      %p189 = scmp.eq.s32.totalorder %s19, 0
      %p190 = por %p188, %p189
      %p191 = scmp.ne.s32.totalorder %s177, %s178
      %p192 = scmp.eq.s32.totalorder %s20, 1
      %p193 = por %p191, %p192
      %p195 = scmp.ne.s32.totalorder %s178, %s194
      %p196 = scmp.eq.s32.totalorder %s20, 0
      %p197 = por %p195, %p196
      %p198 = scmp.le.s32.totalorder 1, %s14
      %p199 = scmp.lt.s32.totalorder %s14, 3
      %p200 = pnand %p198, %p199
      %p201 = pneg %p200
      // Predicated region
      $region9: #{tpu_custom_call.1} parent=5 // pred_check
        _
      $region10: #{tpu_custom_call.1} parent=5 // pred_check_branch
        %203 = sbr.rel (%p200) target = $region12
      $region11: #{tpu_custom_call.1} parent=5 // pred_region
        %s204 = ssub.s32 %s14, 1
        // Predicated region
        $region13: #{tpu_custom_call.1} parent=11 // pred_check
          %p205 = pneg %p75
        $region14: #{tpu_custom_call.1} parent=11 // pred_check_branch
          %207 = sbr.rel (%p205) target = $region16
        $region15: #{tpu_custom_call.1} parent=11 // pred_region
          %209 = vsyncadd [#allocation4], 0
          %s210 = sshll.u32 %s1, 4
          %s211 = int_to_ptr.hbm [resolvable:$true] %s210
          %s212 = sshll.u32 [#allocation3], 4
          %s213 = int_to_ptr.vmem [resolvable:$true] %s212
          %218 = dma.hbm_to_vmem [thread:$0]  %s211, 2048, %s213, [#allocation4], 64, 64, 4
        $region16: #{tpu_custom_call.1} parent=11 // pred_fallthru
          _
        // Predicated region
        $region17: #{tpu_custom_call.1} parent=11 // pred_check
          %p219 = pneg %p101
        $region18: #{tpu_custom_call.1} parent=11 // pred_check_branch
          %221 = sbr.rel (%p219) target = $region20
        $region19: #{tpu_custom_call.1} parent=11 // pred_region
          %p222 = scmp.lt.s32.totalorder %s24, 0
          %s223 = scalar_select %p222, %s24, 0
          %s224 = smul.addr %s223, 4
          %s225 = scalar_lea.vmem %s2, %s224
        $region20: #{tpu_custom_call.1} parent=11 // pred_fallthru
          _
        // Predicated region
        $region21: #{tpu_custom_call.1} parent=11 // pred_check
          %p226 = pneg %p122
        $region22: #{tpu_custom_call.1} parent=11 // pred_check_branch
          %228 = sbr.rel (%p226) target = $region24
        $region23: #{tpu_custom_call.1} parent=11 // pred_region
          _
        $region24: #{tpu_custom_call.1} parent=11 // pred_fallthru
          _
        // Predicated region
        $region25: #{tpu_custom_call.1} parent=11 // pred_check
          %p229 = pneg %p143
        $region26: #{tpu_custom_call.1} parent=11 // pred_check_branch
          %231 = sbr.rel (%p229) target = $region28
        $region27: #{tpu_custom_call.1} parent=11 // pred_region
          _
        $region28: #{tpu_custom_call.1} parent=11 // pred_fallthru
          _
        // Predicated region
        $region29: #{tpu_custom_call.1} parent=11 // pred_check
          %p232 = pneg %p164
        $region30: #{tpu_custom_call.1} parent=11 // pred_check_branch
          %234 = sbr.rel (%p232) target = $region32
        $region31: #{tpu_custom_call.1} parent=11 // pred_region
          %236 = vsyncadd [#allocation6], 0
          %s237 = sshll.u32 %s5, 4
          %s238 = int_to_ptr.hbm [resolvable:$true] %s237
          %s239 = sshll.u32 [#allocation5], 4
          %s240 = int_to_ptr.vmem [resolvable:$true] %s239
          %245 = dma.hbm_to_vmem [thread:$0]  %s238, 2048, %s240, [#allocation6], 128, 128, 8
        $region32: #{tpu_custom_call.1} parent=11 // pred_fallthru
          _
      $region12: #{tpu_custom_call.1} parent=5 // pred_fallthru
        _
      %p246 = scmp.lt.s32.totalorder %s14, 2
      // Predicated region
      $region33: #{tpu_custom_call.1} parent=5 // pred_check
        %p247 = pneg %p246
      $region34: #{tpu_custom_call.1} parent=5 // pred_check_branch
        %249 = sbr.rel (%p247) target = $region36
      $region35: #{tpu_custom_call.1} parent=5 // pred_region
        // Predicated region
        $region37: #{tpu_custom_call.1} parent=35 // pred_check
          %p250 = pneg %p48
        $region38: #{tpu_custom_call.1} parent=35 // pred_check_branch
          %252 = sbr.rel (%p250) target = $region40
        $region39: #{tpu_custom_call.1} parent=35 // pred_region
          %p253 = scmp.lt.s32.totalorder %s21, 1
          %s254 = scalar_select %p253, %s21, 1
          %p255 = scmp.lt.s32.totalorder %s22, 0
          %s256 = scalar_select %p255, %s22, 0
          %s257 = smul.addr %s256, 2
          %s258 = smul.addr %s254, 2
          %s259 = sadd.s32 %s257, %s258
          %s260 = smul.addr %s259, 4
          %s261 = scalar_lea.vmem %s0, %s260
        $region40: #{tpu_custom_call.1} parent=35 // pred_fallthru
          _
      $region36: #{tpu_custom_call.1} parent=5 // pred_fallthru
        _
      %p262 = scmp.le.s32.totalorder 1, %s14
      %p263 = scmp.lt.s32.totalorder %s14, 3
      %p264 = pnand %p262, %p263
      %p265 = pneg %p264
      // Predicated region
      $region41: #{tpu_custom_call.1} parent=5 // pred_check
        _
      $region42: #{tpu_custom_call.1} parent=5 // pred_check_branch
        %267 = sbr.rel (%p264) target = $region44
      $region43: #{tpu_custom_call.1} parent=5 // pred_region
        %s268 = ssub.s32 %s14, 1
        // Predicated region
        $region45: #{tpu_custom_call.1} parent=43 // pred_check
          %p269 = pneg %p75
        $region46: #{tpu_custom_call.1} parent=43 // pred_check_branch
          %271 = sbr.rel (%p269) target = $region48
        $region47: #{tpu_custom_call.1} parent=43 // pred_region
          %273 = dma.done [#allocation4], 2048
        $region48: #{tpu_custom_call.1} parent=43 // pred_fallthru
          _
        // Predicated region
        $region49: #{tpu_custom_call.1} parent=43 // pred_check
          %p274 = pneg %p164
        $region50: #{tpu_custom_call.1} parent=43 // pred_check_branch
          %276 = sbr.rel (%p274) target = $region52
        $region51: #{tpu_custom_call.1} parent=43 // pred_region
          %278 = dma.done [#allocation6], 2048
        $region52: #{tpu_custom_call.1} parent=43 // pred_fallthru
          _
        %p279 = scmp.lt.s32.totalorder %s23, 1
        %s280 = scalar_select %p279, %s23, 1
        %p281 = scmp.lt.s32.totalorder %s24, 0
        %s282 = scalar_select %p281, %s24, 0
        %s283 = smul.addr %s282, 2
        %s284 = smul.addr %s280, 2
        %s285 = sadd.s32 %s283, %s284
        %s286 = smul.addr %s285, 4
        %s287 = scalar_lea.vmem %s0, %s286
        %p288 = pneg %p54
        %p289 = pneg %p51
        %p290 = pneg %p75
        %p291 = pneg %p72
        %p292 = scmp.lt.s32.totalorder %s24, 0
        %s293 = scalar_select %p292, %s24, 0
        %s294 = smul.addr %s293, 4
        %s295 = scalar_lea.vmem %s2, %s294
        %p296 = pneg %p101
        %p297 = pneg %p98
        %p298 = pneg %p122
        %p299 = pneg %p119
        %p300 = pneg %p143
        %p301 = pneg %p140
        %p302 = pneg %p164
        %p303 = pneg %p161
        %p304 = pneg %p190
        %p305 = pneg %p187
        %p306 = scmp.lt.s32.totalorder %s23, 1
        %s307 = scalar_select %p306, %s23, 1
        %s308 = smul.addr %s307, 10
        %s309 = smul.addr %s308, 8
        %s310 = scalar_lea.vmem %s6, %s309
        %p311 = scmp.lt.s32.totalorder %s23, 1
        %s312 = scalar_select %p311, %s23, 1
        %p313 = scmp.lt.s32.totalorder %s24, 0
        %s314 = scalar_select %p313, %s24, 0
        %s315 = smul.addr %s314, 2
        %s316 = smul.addr %s312, 2
        %s317 = sadd.s32 %s315, %s316
        %s318 = smul.addr %s317, 4
        %s319 = scalar_lea.vmem %s0, %s318
        %p320 = scmp.lt.s32.totalorder %s24, 0
        %s321 = scalar_select %p320, %s24, 0
        %s322 = smul.addr %s321, 4
        %s323 = scalar_lea.vmem %s2, %s322
        %p324 = scmp.lt.s32.totalorder %s23, 1
        %s325 = scalar_select %p324, %s23, 1
        %s326 = smul.addr %s325, 10
        %s327 = smul.addr %s326, 8
        %s328 = scalar_lea.vmem %s6, %s327
        %v330 = vld [vmem:[%s319] sm:$0xff]
        %332 = vst [vmem:[#allocation1] ss:$2 sm:$0xff] %v330
        %v333 = vld.sshfl [vmem:[#allocation1] sm:$0xff pattern:$0x75316420]
        %v334 = vld.sshfl [vmem:[#allocation1 + $0x8] sm:$0xff pattern:$0x75316420]
        %337 = vst [vmem:[%s328] sm:$0xf] %v333
        %338 = vst [vmem:[%s328 + $0x8] sm:$0xf] %v334
        %p339 = scmp.eq.s32.totalorder %s24, 0
        // Predicated region
        $region53: #{tpu_custom_call.1} parent=43 // pred_check
          %p340 = pneg %p339
        $region54: #{tpu_custom_call.1} parent=43 // pred_check_branch
          %342 = sbr.rel (%p340) target = $region56
        $region55: #{tpu_custom_call.1} parent=43 // pred_region
          %343 = vst [vmem:[#allocation2] sm:$0xff] 0.0
          %344 = vst [vmem:[#allocation2 + $0x8] sm:$0xff] 0.0
          %345 = vst [vmem:[#allocation2 + $0x10] sm:$0xff] 0.0
          %346 = vst [vmem:[#allocation2 + $0x18] sm:$0xff] 0.0
        $region56: #{tpu_custom_call.1} parent=43 // pred_fallthru
          _
        %347 = vst [vmem:[#allocation1] ss:$2 sm:$0xff] %v330
        %v348 = vld.sshfl [vmem:[#allocation1] sm:$0xff pattern:$0x75316420]
        %v349 = vld.sshfl [vmem:[#allocation1 + $0x8] sm:$0xff pattern:$0x75316420]
        %v352 = vpack.c.bf16 %v348, %v348
        %v353 = vpack.c.bf16 %v349, %v349
        %v354 = vld [vmem:[#allocation3] sm:$0xf]
        %v355 = vld [vmem:[#allocation3 + $0x4] sm:$0xf]
        %v356 = vld [vmem:[#allocation3 + $0x8] sm:$0xf]
        %v357 = vld [vmem:[#allocation3 + $0xc] sm:$0xf]
        %v358 = vld [vmem:[#allocation3 + $0x10] sm:$0xf]
        %v359 = vld [vmem:[#allocation3 + $0x14] sm:$0xf]
        %v360 = vld [vmem:[#allocation3 + $0x18] sm:$0xf]
        %v361 = vld [vmem:[#allocation3 + $0x1c] sm:$0xf]
        %v362 = vld [vmem:[#allocation3 + $0x20] sm:$0xf]
        %v363 = vld [vmem:[#allocation3 + $0x24] sm:$0xf]
        %v364 = vld [vmem:[#allocation3 + $0x28] sm:$0xf]
        %v365 = vld [vmem:[#allocation3 + $0x2c] sm:$0xf]
        %v366 = vld [vmem:[#allocation3 + $0x30] sm:$0xf]
        %v367 = vld [vmem:[#allocation3 + $0x34] sm:$0xf]
        %v368 = vld [vmem:[#allocation3 + $0x38] sm:$0xf]
        %v369 = vld [vmem:[#allocation3 + $0x3c] sm:$0xf]
        %v370 = vld [vmem:[#allocation3 + $0x40] sm:$0xf]
        %v371 = vld [vmem:[#allocation3 + $0x44] sm:$0xf]
        %v372 = vld [vmem:[#allocation3 + $0x48] sm:$0xf]
        %v373 = vld [vmem:[#allocation3 + $0x4c] sm:$0xf]
        %v374 = vld [vmem:[#allocation3 + $0x50] sm:$0xf]
        %v375 = vld [vmem:[#allocation3 + $0x54] sm:$0xf]
        %v376 = vld [vmem:[#allocation3 + $0x58] sm:$0xf]
        %v377 = vld [vmem:[#allocation3 + $0x5c] sm:$0xf]
        %v378 = vld [vmem:[#allocation3 + $0x60] sm:$0xf]
        %v379 = vld [vmem:[#allocation3 + $0x64] sm:$0xf]
        %v380 = vld [vmem:[#allocation3 + $0x68] sm:$0xf]
        %v381 = vld [vmem:[#allocation3 + $0x6c] sm:$0xf]
        %v382 = vld [vmem:[#allocation3 + $0x70] sm:$0xf]
        %v383 = vld [vmem:[#allocation3 + $0x74] sm:$0xf]
        %v384 = vld [vmem:[#allocation3 + $0x78] sm:$0xf]
        %v385 = vld [vmem:[#allocation3 + $0x7c] sm:$0xf]
        %v418 = vunpack.c.l.b16 %v354
        %v419 = vunpack.c.l.b16 %v355
        %v420 = vunpack.c.l.b16 %v356
        %v421 = vunpack.c.l.b16 %v357
        %v422 = vunpack.c.l.b16 %v358
        %v423 = vunpack.c.l.b16 %v359
        %v424 = vunpack.c.l.b16 %v360
        %v425 = vunpack.c.l.b16 %v361
        %v426 = vunpack.c.l.b16 %v362
        %v427 = vunpack.c.l.b16 %v363
        %v428 = vunpack.c.l.b16 %v364
        %v429 = vunpack.c.l.b16 %v365
        %v430 = vunpack.c.l.b16 %v366
        %v431 = vunpack.c.l.b16 %v367
        %v432 = vunpack.c.l.b16 %v368
        %v433 = vunpack.c.l.b16 %v369
        %v434 = vunpack.c.l.b16 %v370
        %v435 = vunpack.c.l.b16 %v371
        %v436 = vunpack.c.l.b16 %v372
        %v437 = vunpack.c.l.b16 %v373
        %v438 = vunpack.c.l.b16 %v374
        %v439 = vunpack.c.l.b16 %v375
        %v440 = vunpack.c.l.b16 %v376
        %v441 = vunpack.c.l.b16 %v377
        %v442 = vunpack.c.l.b16 %v378
        %v443 = vunpack.c.l.b16 %v379
        %v444 = vunpack.c.l.b16 %v380
        %v445 = vunpack.c.l.b16 %v381
        %v446 = vunpack.c.l.b16 %v382
        %v447 = vunpack.c.l.b16 %v383
        %v448 = vunpack.c.l.b16 %v384
        %v449 = vunpack.c.l.b16 %v385
        %v450 = vpack.c.b16 %v419, %v418
        %v451 = vpack.c.b16 %v421, %v420
        %v452 = vpack.c.b16 %v423, %v422
        %v453 = vpack.c.b16 %v425, %v424
        %v454 = vpack.c.b16 %v427, %v426
        %v455 = vpack.c.b16 %v429, %v428
        %v456 = vpack.c.b16 %v431, %v430
        %v457 = vpack.c.b16 %v433, %v432
        %v458 = vpack.c.b16 %v435, %v434
        %v459 = vpack.c.b16 %v437, %v436
        %v460 = vpack.c.b16 %v439, %v438
        %v461 = vpack.c.b16 %v441, %v440
        %v462 = vpack.c.b16 %v443, %v442
        %v463 = vpack.c.b16 %v445, %v444
        %v464 = vpack.c.b16 %v447, %v446
        %v465 = vpack.c.b16 %v449, %v448
        %482 = vmatpush.bf16.msra.mxu0 %v457
        %483 = vmatpush.bf16.msra.mxu0 %v456
        %484 = vmatpush.bf16.msra.mxu0 %v455
        %485 = vmatpush.bf16.msra.mxu0 %v454
        %486 = vmatpush.bf16.msra.mxu0 %v453
        %487 = vmatpush.bf16.msra.mxu0 %v452
        %488 = vmatpush.bf16.msra.mxu0 %v451
        %489 = vmatpush.bf16.msra.mxu0 %v450
        %490 = vmatmul.bf16.gmra.mxu0 %v352
        %v491 = vpop.f32.mrf.mxu0
        %v492 = vadd.f32 0.0, %v491
        %v493 = vpop.f32.mrf.mxu0
        %494 = vdwg.mxu0
        %495 = vmatpush.bf16.msra.mxu0 %v465
        %496 = vmatpush.bf16.msra.mxu0 %v464
        %497 = vmatpush.bf16.msra.mxu0 %v463
        %498 = vmatpush.bf16.msra.mxu0 %v462
        %499 = vmatpush.bf16.msra.mxu0 %v461
        %500 = vmatpush.bf16.msra.mxu0 %v460
        %501 = vmatpush.bf16.msra.mxu0 %v459
        %502 = vmatpush.bf16.msra.mxu0 %v458
        %503 = vmatmul.bf16.gmra.mxu0 %v353
        %v504 = vpop.f32.mrf.mxu0
        %v505 = vadd.f32 %v492, %v504
        %v506 = vpop.f32.mrf.mxu0
        %507 = vdwg.mxu0
        %v508 = vld [vmem:[#allocation2] sm:$0xff]
        %v509 = vld [vmem:[#allocation2 + $0x8] sm:$0xff]
        %v510 = vld [vmem:[#allocation2 + $0x10] sm:$0xff]
        %v511 = vld [vmem:[#allocation2 + $0x18] sm:$0xff]
        %v512 = vld [vmem:[%s323] sm:$0xf]
        %v513 = vld [vmem:[%s323 + $0x4] sm:$0xf]
        %v514 = vld [vmem:[%s323 + $0x8] sm:$0xf]
        %v515 = vld [vmem:[%s323 + $0xc] sm:$0xf]
        %v516 = vpack.c.bf16 %v505, %v505
        %v521 = vunpack.c.l.b16 %v512
        %v522 = vunpack.c.l.b16 %v513
        %v523 = vunpack.c.l.b16 %v514
        %v524 = vunpack.c.l.b16 %v515
        %v525 = vpack.c.b16 %v522, %v521
        %v526 = vpack.c.b16 %v524, %v523
        %vm527 = vcmask 31744
        %v529 = vsel %vm527, %v525, 0
        %v532 = vsel %vm527, %v526, 0
        %vm534 = vcmask 1041408
        %v536 = vsel %vm534, %v516, 0
        %538 = vmatpush.bf16.msra.mxu0 0
        %539 = vmatpush.bf16.msra.mxu0 0
        %540 = vmatpush.bf16.msra.mxu0 0
        %541 = vmatpush.bf16.msra.mxu0 0
        %542 = vmatpush.bf16.msra.mxu0 0
        %543 = vmatpush.bf16.msra.mxu0 0
        %544 = vmatpush.bf16.msra.mxu0 0
        %545 = vmatpush.bf16.msra.mxu0 %v536
        %546 = vmatmul.bf16.gmra.mxu0 %v529
        %v547 = vpop.f32.mrf.mxu0
        %v548 = vadd.f32 0.0, %v547
        %v549 = vpop.f32.mrf.mxu0
        %v550 = vadd.f32 0.0, %v549
        %551 = vmatmul.bf16.gmra.mxu0 %v532
        %v552 = vpop.f32.mrf.mxu0
        %v553 = vadd.f32 0.0, %v552
        %v554 = vpop.f32.mrf.mxu0
        %v555 = vadd.f32 0.0, %v554
        %556 = vdwg.mxu0
        %v557 = vadd.f32 %v508, %v548
        %v558 = vadd.f32 %v509, %v550
        %v559 = vadd.f32 %v510, %v553
        %v560 = vadd.f32 %v511, %v555
        %561 = vst [vmem:[#allocation2] sm:$0xff] %v557
        %562 = vst [vmem:[#allocation2 + $0x8] sm:$0xff] %v558
        %563 = vst [vmem:[#allocation2 + $0x10] sm:$0xff] %v559
        %564 = vst [vmem:[#allocation2 + $0x18] sm:$0xff] %v560
        // Predicated region
        $region57: #{tpu_custom_call.1} parent=43 // pred_check
          %p565 = pneg %p339
        $region58: #{tpu_custom_call.1} parent=43 // pred_check_branch
          %567 = sbr.rel (%p565) target = $region60
        $region59: #{tpu_custom_call.1} parent=43 // pred_region
          %v568 = vld [vmem:[#allocation2] sm:$0xff]
          %v569 = vld [vmem:[#allocation2 + $0x8] sm:$0xff]
          %v570 = vld [vmem:[#allocation2 + $0x10] sm:$0xff]
          %v571 = vld [vmem:[#allocation2 + $0x18] sm:$0xff]
          %v572 = vld [vmem:[%s3] sm:$0xff]
          %v573 = vld [vmem:[%s3 + $0x8] sm:$0xff]
          %v574 = vld [vmem:[%s3 + $0x10] sm:$0xff]
          %v575 = vld [vmem:[%s3 + $0x18] sm:$0xff]
          %577 = vset.pattern.permute.xlu0 0
          %578 = vperm.xlu0 %577, %v572
          %v579 = vpop.permute.xlu0 %578
          %582 = vset.pattern.permute.xlu0 0
          %583 = vperm.xlu0 %582, %v573
          %v584 = vpop.permute.xlu0 %583
          %587 = vset.pattern.permute.xlu0 0
          %588 = vperm.xlu0 %587, %v574
          %v589 = vpop.permute.xlu0 %588
          %592 = vset.pattern.permute.xlu0 0
          %593 = vperm.xlu0 %592, %v575
          %v594 = vpop.permute.xlu0 %593
          %v596 = vadd.f32 %v568, %v579
          %v597 = vadd.f32 %v569, %v584
          %v598 = vadd.f32 %v570, %v589
          %v599 = vadd.f32 %v571, %v594
          %v600 = vmax.f32 %v596, 0.0
          %v601 = vmax.f32 %v597, 0.0
          %v602 = vmax.f32 %v598, 0.0
          %v603 = vmax.f32 %v599, 0.0
          %v604 = vld [vmem:[%s4] sm:$0xff]
          %v605 = vld [vmem:[%s4 + $0x8] sm:$0xff]
          %v606 = vld [vmem:[%s4 + $0x10] sm:$0xff]
          %v607 = vld [vmem:[%s4 + $0x18] sm:$0xff]
          %v608 = vmul.f32 %v600, %v604
          %v609 = vmul.f32 %v601, %v605
          %v610 = vmul.f32 %v602, %v606
          %v611 = vmul.f32 %v603, %v607
          %v612 = vpack.c.bf16 %v609, %v608
          %v613 = vpack.c.bf16 %v611, %v610
          %v614 = vld [vmem:[#allocation5] sm:$0xff]
          %v615 = vld [vmem:[#allocation5 + $0x8] sm:$0xff]
          %v616 = vld [vmem:[#allocation5 + $0x10] sm:$0xff]
          %v617 = vld [vmem:[#allocation5 + $0x18] sm:$0xff]
          %v618 = vld [vmem:[#allocation5 + $0x20] sm:$0xff]
          %v619 = vld [vmem:[#allocation5 + $0x28] sm:$0xff]
          %v620 = vld [vmem:[#allocation5 + $0x30] sm:$0xff]
          %v621 = vld [vmem:[#allocation5 + $0x38] sm:$0xff]
          %v622 = vld [vmem:[#allocation5 + $0x40] sm:$0xff]
          %v623 = vld [vmem:[#allocation5 + $0x48] sm:$0xff]
          %v624 = vld [vmem:[#allocation5 + $0x50] sm:$0xff]
          %v625 = vld [vmem:[#allocation5 + $0x58] sm:$0xff]
          %v626 = vld [vmem:[#allocation5 + $0x60] sm:$0xff]
          %v627 = vld [vmem:[#allocation5 + $0x68] sm:$0xff]
          %v628 = vld [vmem:[#allocation5 + $0x70] sm:$0xff]
          %v629 = vld [vmem:[#allocation5 + $0x78] sm:$0xff]
          %v646 = vunpack.c.l.b16 %v614
          %v647 = vunpack.c.h.b16 %v614
          %v648 = vunpack.c.l.b16 %v615
          %v649 = vunpack.c.h.b16 %v615
          %v650 = vunpack.c.l.b16 %v616
          %v651 = vunpack.c.h.b16 %v616
          %v652 = vunpack.c.l.b16 %v617
          %v653 = vunpack.c.h.b16 %v617
          %v654 = vunpack.c.l.b16 %v618
          %v655 = vunpack.c.h.b16 %v618
          %v656 = vunpack.c.l.b16 %v619
          %v657 = vunpack.c.h.b16 %v619
          %v658 = vunpack.c.l.b16 %v620
          %v659 = vunpack.c.h.b16 %v620
          %v660 = vunpack.c.l.b16 %v621
          %v661 = vunpack.c.h.b16 %v621
          %v662 = vunpack.c.l.b16 %v622
          %v663 = vunpack.c.h.b16 %v622
          %v664 = vunpack.c.l.b16 %v623
          %v665 = vunpack.c.h.b16 %v623
          %v666 = vunpack.c.l.b16 %v624
          %v667 = vunpack.c.h.b16 %v624
          %v668 = vunpack.c.l.b16 %v625
          %v669 = vunpack.c.h.b16 %v625
          %v670 = vunpack.c.l.b16 %v626
          %v671 = vunpack.c.h.b16 %v626
          %v672 = vunpack.c.l.b16 %v627
          %v673 = vunpack.c.h.b16 %v627
          %v674 = vunpack.c.l.b16 %v628
          %v675 = vunpack.c.h.b16 %v628
          %v676 = vunpack.c.l.b16 %v629
          %v677 = vunpack.c.h.b16 %v629
          %v678 = vpack.c.b16 %v648, %v646
          %v679 = vpack.c.b16 %v649, %v647
          %v680 = vpack.c.b16 %v652, %v650
          %v681 = vpack.c.b16 %v653, %v651
          %v682 = vpack.c.b16 %v656, %v654
          %v683 = vpack.c.b16 %v657, %v655
          %v684 = vpack.c.b16 %v660, %v658
          %v685 = vpack.c.b16 %v661, %v659
          %v686 = vpack.c.b16 %v664, %v662
          %v687 = vpack.c.b16 %v665, %v663
          %v688 = vpack.c.b16 %v668, %v666
          %v689 = vpack.c.b16 %v669, %v667
          %v690 = vpack.c.b16 %v672, %v670
          %v691 = vpack.c.b16 %v673, %v671
          %v692 = vpack.c.b16 %v676, %v674
          %v693 = vpack.c.b16 %v677, %v675
          %710 = vmatpush.bf16.msra.mxu0 %v692
          %711 = vmatpush.bf16.msra.mxu0 %v690
          %712 = vmatpush.bf16.msra.mxu0 %v688
          %713 = vmatpush.bf16.msra.mxu0 %v686
          %714 = vmatpush.bf16.msra.mxu0 %v684
          %715 = vmatpush.bf16.msra.mxu0 %v682
          %716 = vmatpush.bf16.msra.mxu0 %v680
          %717 = vmatpush.bf16.msra.mxu0 %v678
          %718 = vmatmul.bf16.gmra.mxu0 %v612
          %v719 = vpop.f32.mrf.mxu0
          %v720 = vadd.f32 0.0, %v719
          %v721 = vpop.f32.mrf.mxu0
          %v722 = vadd.f32 0.0, %v721
          %723 = vmatmul.bf16.gmra.mxu0 %v613
          %v724 = vpop.f32.mrf.mxu0
          %v725 = vadd.f32 0.0, %v724
          %v726 = vpop.f32.mrf.mxu0
          %v727 = vadd.f32 0.0, %v726
          %728 = vdwg.mxu0
          %729 = vmatpush.bf16.msra.mxu0 %v693
          %730 = vmatpush.bf16.msra.mxu0 %v691
          %731 = vmatpush.bf16.msra.mxu0 %v689
          %732 = vmatpush.bf16.msra.mxu0 %v687
          %733 = vmatpush.bf16.msra.mxu0 %v685
          %734 = vmatpush.bf16.msra.mxu0 %v683
          %735 = vmatpush.bf16.msra.mxu0 %v681
          %736 = vmatpush.bf16.msra.mxu0 %v679
          %737 = vmatmul.bf16.gmra.mxu0 %v612
          %v738 = vpop.f32.mrf.mxu0
          %v739 = vadd.f32 0.0, %v738
          %v740 = vpop.f32.mrf.mxu0
          %v741 = vadd.f32 0.0, %v740
          %742 = vmatmul.bf16.gmra.mxu0 %v613
          %v743 = vpop.f32.mrf.mxu0
          %v744 = vadd.f32 0.0, %v743
          %v745 = vpop.f32.mrf.mxu0
          %v746 = vadd.f32 0.0, %v745
          %747 = vdwg.mxu0
          %vm756 = vcmask 1043456
          %v757 = vrot.slane %v720, 4
          %v758 = vrot.slane %v739, 4
          %v759 = vrot.slane %v722, 4
          %v760 = vsel %vm756, %v757, %v759
          %v761 = vrot.slane %v741, 4
          %v762 = vsel %vm756, %v758, %v761
          %v763 = vrot.slane %v725, 4
          %v764 = vsel %vm756, %v759, %v763
          %v765 = vrot.slane %v744, 4
          %v766 = vsel %vm756, %v761, %v765
          %v767 = vrot.slane %v727, 4
          %v768 = vsel %vm756, %v763, %v767
          %v769 = vrot.slane %v746, 4
          %v770 = vsel %vm756, %v765, %v769
          %781 = vst [vmem:[%s328] sm:$0xf0] %v757
          %782 = vst [vmem:[%s328 + $0x8] sm:$0xf0] %v758
          %783 = vst [vmem:[%s328 + $0x10] sm:$0xff] %v760
          %784 = vst [vmem:[%s328 + $0x18] sm:$0xff] %v762
          %785 = vst [vmem:[%s328 + $0x20] sm:$0xff] %v764
          %786 = vst [vmem:[%s328 + $0x28] sm:$0xff] %v766
          %787 = vst [vmem:[%s328 + $0x30] sm:$0xff] %v768
          %788 = vst [vmem:[%s328 + $0x38] sm:$0xff] %v770
          %789 = vst [vmem:[%s328 + $0x40] sm:$0xf] %v767
          %790 = vst [vmem:[%s328 + $0x48] sm:$0xf] %v769
        $region60: #{tpu_custom_call.1} parent=43 // pred_fallthru
          _
        %p791 = scmp.lt.s32.totalorder %s23, 1
        %s792 = scalar_select %p791, %s23, 1
        %s793 = smul.addr %s792, 10
        %s794 = smul.addr %s793, 8
        %s795 = scalar_lea.vmem %s6, %s794
        // Predicated region
        $region61: #{tpu_custom_call.1} parent=43 // pred_check
          %p796 = pneg %p187
        $region62: #{tpu_custom_call.1} parent=43 // pred_check_branch
          %798 = sbr.rel (%p796) target = $region64
        $region63: #{tpu_custom_call.1} parent=43 // pred_region
          _
        $region64: #{tpu_custom_call.1} parent=43 // pred_fallthru
          _
      $region44: #{tpu_custom_call.1} parent=5 // pred_fallthru
        _
      %p799 = scmp.le.s32.totalorder 2, %s14
      // Predicated region
      $region65: #{tpu_custom_call.1} parent=5 // pred_check
        %p800 = pneg %p799
      $region66: #{tpu_custom_call.1} parent=5 // pred_check_branch
        %802 = sbr.rel (%p800) target = $region68
      $region67: #{tpu_custom_call.1} parent=5 // pred_region
        %s803 = ssub.s32 %s14, 2
        // Predicated region
        $region69: #{tpu_custom_call.1} parent=67 // pred_check
          %p804 = pneg %p193
        $region70: #{tpu_custom_call.1} parent=67 // pred_check_branch
          %806 = sbr.rel (%p804) target = $region72
        $region71: #{tpu_custom_call.1} parent=67 // pred_region
          %p807 = scmp.lt.s32.totalorder %s25, 1
          %s808 = scalar_select %p807, %s25, 1
          %s809 = smul.addr %s808, 10
          %s810 = smul.addr %s809, 8
          %s811 = scalar_lea.vmem %s6, %s810
        $region72: #{tpu_custom_call.1} parent=67 // pred_fallthru
          _
      $region68: #{tpu_custom_call.1} parent=5 // pred_fallthru
        _
    $region6: #{tpu_custom_call.1} parent=1 // loop_footer
      %s18 = sadd.s32 1, %s14
    $region7: #{tpu_custom_call.1} parent=1 // loop_footer_branch
      %13 = sbr.rel target = $region3
    $region8: #{tpu_custom_call.1} parent=1 // loop_exit
      _
    %812 = vsyncpa [#allocation4], 1
    %s813 = scalar_lea.sflag [#allocation4], 1
    %814 = vsyncpa %s813, 1
    %815 = vsyncpa [#allocation6], 1

</llo_original>
